<compile_context>
chip_gen: v6e
topology: v6e:2x2x1
jax: 0.10.0
libtpu: 0.0.40
codegen_flags: <defaults>
</compile_context>

<pallas_src>
import functools
import math

import jax
import jax.numpy as jnp
from jax.experimental import pallas as pl
from jax.experimental.pallas import tpu as pltpu


def _round_up(n, m):
    return ((n + m - 1) // m) * m


# ---------------------------------------------------------------------------
# Fused kernel: whole Postnet for one batch element per grid step.
# ---------------------------------------------------------------------------
def _postnet_kernel(T, K, pad, x_ref, w_ref, scale_ref, shift_ref, o_ref,
                    act_a, act_b):
    # x_ref:     (1, T + 2*pad, Cp)  bf16  time- and channel-padded input
    # w_ref:     (L, K*Cp, Cp)       bf16  per-layer im2col weights
    # scale_ref: (L, 1, Cp)          f32   gamma / sqrt(var + eps)      (0 on pad lanes)
    # shift_ref: (L, 1, Cp)          f32   beta + (bias - mean) * scale (0 on pad lanes)
    # o_ref:     (1, T, Cp)          f32   lane-dense output (sliced in wrapper)
    # act_a/b:   (T + 2*pad, Cp)     bf16  VMEM ping-pong activation buffers
    L = w_ref.shape[0]
    Cp = o_ref.shape[-1]
    bufs = (act_a, act_b)

    # Zero the time halos of the scratch buffers (interiors are overwritten every
    # layer) -> exact 'same' padding for the intermediate convs, no HBM jnp.pad.
    halo = jnp.zeros((pad, Cp), act_a.dtype)
    for buf in bufs:
        buf[0:pad, :] = halo
        buf[pad + T:pad + T + pad, :] = halo

    def layer(l, tap, store, apply_tanh):
        # im2col: stack the K taps along the contraction -> one MXU matmul with
        # contraction K*Cp instead of K narrow dots + K-1 VPU accumulate passes.
        win = jnp.concatenate([tap(k) for k in range(K)], axis=1)        # (T, K*Cp) bf16
        acc = jnp.dot(win, w_ref[l], preferred_element_type=jnp.float32)  # MXU, f32 acc
        y = acc * scale_ref[l] + shift_ref[l]                             # BN + bias, f32
        if apply_tanh:
            y = jnp.tanh(y)
        store(y)

    def store_into(buf):
        def _store(y):
            buf[pad:pad + T, :] = y.astype(buf.dtype)
        return _store

    # Layer 0: reads the padded network input block.
    layer(0, lambda k: x_ref[0, k:k + T, :], store_into(bufs[0]), True)
    # Middle layers: ping-pong between the two VMEM scratch buffers.
    for l in range(1, L - 1):
        src, dst = bufs[(l - 1) % 2], bufs[l % 2]
        layer(l, lambda k, s=src: s[k:k + T, :], store_into(dst), True)

    # Last layer: no tanh, write straight to the lane-dense output block.
    last_src = bufs[(L - 2) % 2]

    def store_out(y):
        o_ref[0] = y.astype(o_ref.dtype)

    layer(L - 1, lambda k, s=last_src: s[k:k + T, :], store_out, False)


# ---------------------------------------------------------------------------
# One-time parameter preparation (hoisted out of the forward path).
# ---------------------------------------------------------------------------
def prepare_postnet_params(params, eps=1e-5):
    """Weight relayout to im2col (K*Cp, Cp), lane padding to 128, BN folding with
    the conv bias, and the bf16 casts — all done once at init."""
    L = len(params)
    K = params[0]["w"].shape[-1]
    cp = max(_round_up(max(p["w"].shape[0], p["w"].shape[1]), 128) for p in params)
    ws, scales, shifts = [], [], []
    for p in params:
        cout, cin, k = p["w"].shape
        assert k == K
        inv_std = 1.0 / jnp.sqrt(p["var"] + eps)
        scale = p["gamma"] * inv_std                        # (Cout,)
        shift = p["beta"] + (p["b"] - p["mean"]) * scale    # conv bias folded in
        w_t = jnp.transpose(p["w"], (2, 1, 0))              # (K, Cin, Cout)
        w_t = jnp.pad(w_t, ((0, 0), (0, cp - cin), (0, cp - cout)))
        ws.append(w_t.reshape(K * cp, cp))
        scales.append(jnp.pad(scale, (0, cp - cout)))       # 0 on padded lanes
        shifts.append(jnp.pad(shift, (0, cp - cout)))       # 0 on padded lanes
    return dict(
        W=jnp.stack(ws).astype(jnp.bfloat16),                           # (L, K*Cp, Cp)
        scale=jnp.stack(scales).reshape(L, 1, cp).astype(jnp.float32),  # (L, 1, Cp)
        shift=jnp.stack(shifts).reshape(L, 1, cp).astype(jnp.float32),  # (L, 1, Cp)
        K=K, L=L, cp=cp,
    )


def postnet_forward(x, prep):
    """x: (B, T, num_mels) -> (B, T, num_mels). Equivalent to PyTorch
    Postnet.forward in eval mode (dropout = identity, BN uses running stats)."""
    # TODO(synk): training-mode stochastic Dropout / batch-stat BatchNorm not implemented
    B, T, num_mels = x.shape
    K, L, cp = prep["K"], prep["L"], prep["cp"]
    pad = (K - 1) // 2
    tpad = T + 2 * pad
    # Single pad of the network input: 'same' time halo + lane-dense channels + bf16.
    xp = jnp.pad(x, ((0, 0), (pad, pad), (0, cp - num_mels))).astype(jnp.bfloat16)

    out = pl.pallas_call(
        functools.partial(_postnet_kernel, T, K, pad),
        out_shape=jax.ShapeDtypeStruct((B, T, cp), jnp.float32),
        grid_spec=pltpu.PrefetchScalarGridSpec(
            num_scalar_prefetch=0,
            grid=(B,),
            in_specs=[
                pl.BlockSpec((1, tpad, cp), lambda b: (b, 0, 0)),
                pl.BlockSpec((L, K * cp, cp), lambda b: (0, 0, 0)),
                pl.BlockSpec((L, 1, cp), lambda b: (0, 0, 0)),
                pl.BlockSpec((L, 1, cp), lambda b: (0, 0, 0)),
            ],
            out_specs=pl.BlockSpec((1, T, cp), lambda b: (b, 0, 0)),
            scratch_shapes=[
                pltpu.VMEM((tpad, cp), jnp.bfloat16),
                pltpu.VMEM((tpad, cp), jnp.bfloat16),
            ],
        ),
        compiler_params=pltpu.CompilerParams(
            dimension_semantics=("parallel",)),
    )(xp, prep["W"], prep["scale"], prep["shift"])
    return out[:, :, :num_mels]


# ---------------------------------------------------------------------------
# Deterministic parameter construction (mirrors module __init__ shapes).
# ---------------------------------------------------------------------------
def xavier_uniform(key, cout, cin, k, gain):
    fan_in, fan_out = cin * k, cout * k
    bound = gain * math.sqrt(6.0 / (fan_in + fan_out))
    return jax.random.uniform(key, (cout, cin, k), jnp.float32, -bound, bound)


def init_postnet_params(key, num_mels, embed_dim, kernel_size, n_convolutions):
    gains = {"tanh": 5.0 / 3.0, "linear": 1.0}
    dims = ([(num_mels, embed_dim, "tanh")]
            + [(embed_dim, embed_dim, "tanh")] * (n_convolutions - 2)
            + [(embed_dim, num_mels, "linear")])
    params = []
    for (cin, cout, gain_name) in dims:
        key, kw, kb, kg, kbe, km, kv = jax.random.split(key, 7)
        params.append(dict(
            w=xavier_uniform(kw, cout, cin, kernel_size, gains[gain_name]),
            b=jax.random.normal(kb, (cout,), jnp.float32) * 0.1,
            gamma=1.0 + 0.1 * jax.random.normal(kg, (cout,), jnp.float32),
            beta=0.1 * jax.random.normal(kbe, (cout,), jnp.float32),
            mean=0.1 * jax.random.normal(km, (cout,), jnp.float32),
            var=jnp.abs(1.0 + 0.1 * jax.random.normal(kv, (cout,), jnp.float32)),
        ))
    return params


# ---------------------------------------------------------------------------
# Pure-JAX eval-mode reference (f32, highest precision) for a sanity check.
# ---------------------------------------------------------------------------
def postnet_reference(x, params, eps=1e-5):
    n = len(params)
    for i, p in enumerate(params):
        w = jnp.transpose(p["w"], (2, 1, 0))   # (K, Cin, Cout)
        k = w.shape[0]
        pad = (k - 1) // 2
        y = jax.lax.conv_general_dilated(
            x, w, window_strides=(1,), padding=[(pad, pad)],
            dimension_numbers=("NWC", "WIO", "NWC"),
            precision=jax.lax.Precision.HIGHEST) + p["b"]
        scale = p["gamma"] / jnp.sqrt(p["var"] + eps)
        y = (y - p["mean"]) * scale + p["beta"]
        x = jnp.tanh(y) if i < n - 1 else y
    return x


if __name__ == "__main__":
    # Small config consistent with the module: 5 conv layers, kernel size 5.
    num_mels = 8
    postnet_embedding_dim = 32
    postnet_kernel_size = 5
    postnet_n_convolutions = 5
    B, T = 2, 16

    key = jax.random.PRNGKey(0)
    key_x, key_p = jax.random.split(key)
    x = jax.random.normal(key_x, (B, T, num_mels), jnp.float32)

    params = init_postnet_params(key_p, num_mels, postnet_embedding_dim,
                                 postnet_kernel_size, postnet_n_convolutions)
    prep = prepare_postnet_params(params)

    out = postnet_forward(x, prep)
    out = jax.block_until_ready(out)
    assert out.shape == (B, T, num_mels), out.shape
    assert jnp.all(jnp.isfinite(out))

    # Loose numeric sanity check (bf16 MXU operands -> small tolerance).
    ref = postnet_reference(x, params)
    assert float(jnp.max(jnp.abs(out - ref))) < 0.25

    print("KERNEL_OK")
</pallas_src>

<mosaic_0001>
module attributes {stable_mosaic.version = 11 : i64} {
  func.func @_postnet_kernel(%arg0: i32, %arg1: memref<1x20x128xbf16, #tpu.memory_space<vmem>>, %arg2: memref<5x640x128xbf16, #tpu.memory_space<vmem>>, %arg3: memref<5x1x128xf32, #tpu.memory_space<vmem>>, %arg4: memref<5x1x128xf32, #tpu.memory_space<vmem>>, %arg5: memref<1x16x128xf32, #tpu.memory_space<vmem>>, %arg6: memref<20x128xbf16, #tpu.memory_space<vmem>>, %arg7: memref<20x128xbf16, #tpu.memory_space<vmem>>) attributes {dimension_semantics = [#tpu.dimension_semantics<parallel>], iteration_bounds = array<i64: 2>, scalar_prefetch = 0 : i64, scratch_operands = 2 : i64, tpu.core_type = #tpu.core_type<tc>, window_params = [{transform_indices = @transform_0, window_bounds = array<i64: 1, 20, 128>}, {pipeline_mode = #tpu.pipeline_mode<synchronous>, transform_indices = @transform_1, window_bounds = array<i64: 5, 640, 128>}, {pipeline_mode = #tpu.pipeline_mode<synchronous>, transform_indices = @transform_2, window_bounds = array<i64: 5, 1, 128>}, {pipeline_mode = #tpu.pipeline_mode<synchronous>, transform_indices = @transform_3, window_bounds = array<i64: 5, 1, 128>}, {transform_indices = @transform_4, window_bounds = array<i64: 1, 16, 128>}]} {
    %cst = arith.constant 0.000000e+00 : bf16
    %0 = vector.broadcast %cst : bf16 to vector<2x128xbf16>
    %c0 = arith.constant 0 : index
    %c0_0 = arith.constant 0 : index
    %1 = vector.load %arg6[%c0, %c0_0] : memref<20x128xbf16, #tpu.memory_space<vmem>>, vector<2x128xbf16>
    tpu.vector_store %arg6[%c0, %c0_0], %0 {strides = array<i32>} : memref<20x128xbf16, #tpu.memory_space<vmem>>, vector<2x128xbf16>,
    %c18 = arith.constant 18 : index
    %c0_1 = arith.constant 0 : index
    %2 = vector.load %arg6[%c18, %c0_1] : memref<20x128xbf16, #tpu.memory_space<vmem>>, vector<2x128xbf16>
    tpu.vector_store %arg6[%c18, %c0_1], %0 {strides = array<i32>} : memref<20x128xbf16, #tpu.memory_space<vmem>>, vector<2x128xbf16>,
    %c0_2 = arith.constant 0 : index
    %c0_3 = arith.constant 0 : index
    %3 = vector.load %arg7[%c0_2, %c0_3] : memref<20x128xbf16, #tpu.memory_space<vmem>>, vector<2x128xbf16>
    tpu.vector_store %arg7[%c0_2, %c0_3], %0 {strides = array<i32>} : memref<20x128xbf16, #tpu.memory_space<vmem>>, vector<2x128xbf16>,
    %c18_4 = arith.constant 18 : index
    %c0_5 = arith.constant 0 : index
    %4 = vector.load %arg7[%c18_4, %c0_5] : memref<20x128xbf16, #tpu.memory_space<vmem>>, vector<2x128xbf16>
    tpu.vector_store %arg7[%c18_4, %c0_5], %0 {strides = array<i32>} : memref<20x128xbf16, #tpu.memory_space<vmem>>, vector<2x128xbf16>,
    %c0_6 = arith.constant 0 : index
    %c0_7 = arith.constant 0 : index
    %c0_8 = arith.constant 0 : index
    %5 = vector.load %arg1[%c0_6, %c0_7, %c0_8] : memref<1x20x128xbf16, #tpu.memory_space<vmem>>, vector<1x16x128xbf16>
    %6 = vector.shape_cast %5 : vector<1x16x128xbf16> to vector<16x128xbf16>
    %c0_9 = arith.constant 0 : index
    %c1 = arith.constant 1 : index
    %c0_10 = arith.constant 0 : index
    %7 = vector.load %arg1[%c0_9, %c1, %c0_10] : memref<1x20x128xbf16, #tpu.memory_space<vmem>>, vector<1x16x128xbf16>
    %8 = vector.shape_cast %7 : vector<1x16x128xbf16> to vector<16x128xbf16>
    %c0_11 = arith.constant 0 : index
    %c2 = arith.constant 2 : index
    %c0_12 = arith.constant 0 : index
    %9 = vector.load %arg1[%c0_11, %c2, %c0_12] : memref<1x20x128xbf16, #tpu.memory_space<vmem>>, vector<1x16x128xbf16>
    %10 = vector.shape_cast %9 : vector<1x16x128xbf16> to vector<16x128xbf16>
    %c0_13 = arith.constant 0 : index
    %c3 = arith.constant 3 : index
    %c0_14 = arith.constant 0 : index
    %11 = vector.load %arg1[%c0_13, %c3, %c0_14] : memref<1x20x128xbf16, #tpu.memory_space<vmem>>, vector<1x16x128xbf16>
    %12 = vector.shape_cast %11 : vector<1x16x128xbf16> to vector<16x128xbf16>
    %c0_15 = arith.constant 0 : index
    %c4 = arith.constant 4 : index
    %c0_16 = arith.constant 0 : index
    %13 = vector.load %arg1[%c0_15, %c4, %c0_16] : memref<1x20x128xbf16, #tpu.memory_space<vmem>>, vector<1x16x128xbf16>
    %14 = vector.shape_cast %13 : vector<1x16x128xbf16> to vector<16x128xbf16>
    %15 = tpu.concatenate %6, %8, %10, %12, %14 in 1 : vector<16x128xbf16>, vector<16x128xbf16>, vector<16x128xbf16>, vector<16x128xbf16>, vector<16x128xbf16> -> vector<16x640xbf16>
    %c0_17 = arith.constant 0 : index
    %c0_18 = arith.constant 0 : index
    %c0_19 = arith.constant 0 : index
    %16 = vector.load %arg2[%c0_17, %c0_18, %c0_19] : memref<5x640x128xbf16, #tpu.memory_space<vmem>>, vector<1x640x128xbf16>
    %17 = vector.shape_cast %16 : vector<1x640x128xbf16> to vector<640x128xbf16>
    %cst_20 = arith.constant dense<0.000000e+00> : vector<16x128xf32>
    %18 = tpu.matmul %15, %17, %cst_20 {dimension_numbers = #tpu.dot_dimension_numbers<[1], [0], [0], [1], [0, 0, 1, 1], [], []>} : vector<16x640xbf16>, vector<640x128xbf16>, vector<16x128xf32> -> vector<16x128xf32>
    %c0_21 = arith.constant 0 : index
    %c0_22 = arith.constant 0 : index
    %c0_23 = arith.constant 0 : index
    %19 = vector.load %arg3[%c0_21, %c0_22, %c0_23] : memref<5x1x128xf32, #tpu.memory_space<vmem>>, vector<1x1x128xf32>
    %20 = vector.shape_cast %19 : vector<1x1x128xf32> to vector<1x128xf32>
    %21 = vector.broadcast %20 : vector<1x128xf32> to vector<16x128xf32>
    %22 = arith.mulf %18, %21 : vector<16x128xf32>
    %c0_24 = arith.constant 0 : index
    %c0_25 = arith.constant 0 : index
    %c0_26 = arith.constant 0 : index
    %23 = vector.load %arg4[%c0_24, %c0_25, %c0_26] : memref<5x1x128xf32, #tpu.memory_space<vmem>>, vector<1x1x128xf32>
    %24 = vector.shape_cast %23 : vector<1x1x128xf32> to vector<1x128xf32>
    %25 = vector.broadcast %24 : vector<1x128xf32> to vector<16x128xf32>
    %26 = arith.addf %22, %25 : vector<16x128xf32>
    %27 = math.tanh %26 : vector<16x128xf32>
    %28 = arith.truncf %27 : vector<16x128xf32> to vector<16x128xbf16>
    %c2_27 = arith.constant 2 : index
    %c0_28 = arith.constant 0 : index
    %29 = vector.load %arg6[%c2_27, %c0_28] : memref<20x128xbf16, #tpu.memory_space<vmem>>, vector<16x128xbf16>
    tpu.vector_store %arg6[%c2_27, %c0_28], %28 {strides = array<i32>} : memref<20x128xbf16, #tpu.memory_space<vmem>>, vector<16x128xbf16>,
    %c0_29 = arith.constant 0 : index
    %c0_30 = arith.constant 0 : index
    %30 = vector.load %arg6[%c0_29, %c0_30] : memref<20x128xbf16, #tpu.memory_space<vmem>>, vector<16x128xbf16>
    %c1_31 = arith.constant 1 : index
    %c0_32 = arith.constant 0 : index
    %31 = vector.load %arg6[%c1_31, %c0_32] : memref<20x128xbf16, #tpu.memory_space<vmem>>, vector<16x128xbf16>
    %c2_33 = arith.constant 2 : index
    %c0_34 = arith.constant 0 : index
    %32 = vector.load %arg6[%c2_33, %c0_34] : memref<20x128xbf16, #tpu.memory_space<vmem>>, vector<16x128xbf16>
    %c3_35 = arith.constant 3 : index
    %c0_36 = arith.constant 0 : index
    %33 = vector.load %arg6[%c3_35, %c0_36] : memref<20x128xbf16, #tpu.memory_space<vmem>>, vector<16x128xbf16>
    %c4_37 = arith.constant 4 : index
    %c0_38 = arith.constant 0 : index
    %34 = vector.load %arg6[%c4_37, %c0_38] : memref<20x128xbf16, #tpu.memory_space<vmem>>, vector<16x128xbf16>
    %35 = tpu.concatenate %30, %31, %32, %33, %34 in 1 : vector<16x128xbf16>, vector<16x128xbf16>, vector<16x128xbf16>, vector<16x128xbf16>, vector<16x128xbf16> -> vector<16x640xbf16>
    %c1_39 = arith.constant 1 : index
    %c0_40 = arith.constant 0 : index
    %c0_41 = arith.constant 0 : index
    %36 = vector.load %arg2[%c1_39, %c0_40, %c0_41] : memref<5x640x128xbf16, #tpu.memory_space<vmem>>, vector<1x640x128xbf16>
    %37 = vector.shape_cast %36 : vector<1x640x128xbf16> to vector<640x128xbf16>
    %cst_42 = arith.constant dense<0.000000e+00> : vector<16x128xf32>
    %38 = tpu.matmul %35, %37, %cst_42 {dimension_numbers = #tpu.dot_dimension_numbers<[1], [0], [0], [1], [0, 0, 1, 1], [], []>} : vector<16x640xbf16>, vector<640x128xbf16>, vector<16x128xf32> -> vector<16x128xf32>
    %c1_43 = arith.constant 1 : index
    %c0_44 = arith.constant 0 : index
    %c0_45 = arith.constant 0 : index
    %39 = vector.load %arg3[%c1_43, %c0_44, %c0_45] : memref<5x1x128xf32, #tpu.memory_space<vmem>>, vector<1x1x128xf32>
    %40 = vector.shape_cast %39 : vector<1x1x128xf32> to vector<1x128xf32>
    %41 = vector.broadcast %40 : vector<1x128xf32> to vector<16x128xf32>
    %42 = arith.mulf %38, %41 : vector<16x128xf32>
    %c1_46 = arith.constant 1 : index
    %c0_47 = arith.constant 0 : index
    %c0_48 = arith.constant 0 : index
    %43 = vector.load %arg4[%c1_46, %c0_47, %c0_48] : memref<5x1x128xf32, #tpu.memory_space<vmem>>, vector<1x1x128xf32>
    %44 = vector.shape_cast %43 : vector<1x1x128xf32> to vector<1x128xf32>
    %45 = vector.broadcast %44 : vector<1x128xf32> to vector<16x128xf32>
    %46 = arith.addf %42, %45 : vector<16x128xf32>
    %47 = math.tanh %46 : vector<16x128xf32>
    %48 = arith.truncf %47 : vector<16x128xf32> to vector<16x128xbf16>
    %c2_49 = arith.constant 2 : index
    %c0_50 = arith.constant 0 : index
    %49 = vector.load %arg7[%c2_49, %c0_50] : memref<20x128xbf16, #tpu.memory_space<vmem>>, vector<16x128xbf16>
    tpu.vector_store %arg7[%c2_49, %c0_50], %48 {strides = array<i32>} : memref<20x128xbf16, #tpu.memory_space<vmem>>, vector<16x128xbf16>,
    %c0_51 = arith.constant 0 : index
    %c0_52 = arith.constant 0 : index
    %50 = vector.load %arg7[%c0_51, %c0_52] : memref<20x128xbf16, #tpu.memory_space<vmem>>, vector<16x128xbf16>
    %c1_53 = arith.constant 1 : index
    %c0_54 = arith.constant 0 : index
    %51 = vector.load %arg7[%c1_53, %c0_54] : memref<20x128xbf16, #tpu.memory_space<vmem>>, vector<16x128xbf16>
    %c2_55 = arith.constant 2 : index
    %c0_56 = arith.constant 0 : index
    %52 = vector.load %arg7[%c2_55, %c0_56] : memref<20x128xbf16, #tpu.memory_space<vmem>>, vector<16x128xbf16>
    %c3_57 = arith.constant 3 : index
    %c0_58 = arith.constant 0 : index
    %53 = vector.load %arg7[%c3_57, %c0_58] : memref<20x128xbf16, #tpu.memory_space<vmem>>, vector<16x128xbf16>
    %c4_59 = arith.constant 4 : index
    %c0_60 = arith.constant 0 : index
    %54 = vector.load %arg7[%c4_59, %c0_60] : memref<20x128xbf16, #tpu.memory_space<vmem>>, vector<16x128xbf16>
    %55 = tpu.concatenate %50, %51, %52, %53, %54 in 1 : vector<16x128xbf16>, vector<16x128xbf16>, vector<16x128xbf16>, vector<16x128xbf16>, vector<16x128xbf16> -> vector<16x640xbf16>
    %c2_61 = arith.constant 2 : index
    %c0_62 = arith.constant 0 : index
    %c0_63 = arith.constant 0 : index
    %56 = vector.load %arg2[%c2_61, %c0_62, %c0_63] : memref<5x640x128xbf16, #tpu.memory_space<vmem>>, vector<1x640x128xbf16>
    %57 = vector.shape_cast %56 : vector<1x640x128xbf16> to vector<640x128xbf16>
    %cst_64 = arith.constant dense<0.000000e+00> : vector<16x128xf32>
    %58 = tpu.matmul %55, %57, %cst_64 {dimension_numbers = #tpu.dot_dimension_numbers<[1], [0], [0], [1], [0, 0, 1, 1], [], []>} : vector<16x640xbf16>, vector<640x128xbf16>, vector<16x128xf32> -> vector<16x128xf32>
    %c2_65 = arith.constant 2 : index
    %c0_66 = arith.constant 0 : index
    %c0_67 = arith.constant 0 : index
    %59 = vector.load %arg3[%c2_65, %c0_66, %c0_67] : memref<5x1x128xf32, #tpu.memory_space<vmem>>, vector<1x1x128xf32>
    %60 = vector.shape_cast %59 : vector<1x1x128xf32> to vector<1x128xf32>
    %61 = vector.broadcast %60 : vector<1x128xf32> to vector<16x128xf32>
    %62 = arith.mulf %58, %61 : vector<16x128xf32>
    %c2_68 = arith.constant 2 : index
    %c0_69 = arith.constant 0 : index
    %c0_70 = arith.constant 0 : index
    %63 = vector.load %arg4[%c2_68, %c0_69, %c0_70] : memref<5x1x128xf32, #tpu.memory_space<vmem>>, vector<1x1x128xf32>
    %64 = vector.shape_cast %63 : vector<1x1x128xf32> to vector<1x128xf32>
    %65 = vector.broadcast %64 : vector<1x128xf32> to vector<16x128xf32>
    %66 = arith.addf %62, %65 : vector<16x128xf32>
    %67 = math.tanh %66 : vector<16x128xf32>
    %68 = arith.truncf %67 : vector<16x128xf32> to vector<16x128xbf16>
    %c2_71 = arith.constant 2 : index
    %c0_72 = arith.constant 0 : index
    %69 = vector.load %arg6[%c2_71, %c0_72] : memref<20x128xbf16, #tpu.memory_space<vmem>>, vector<16x128xbf16>
    tpu.vector_store %arg6[%c2_71, %c0_72], %68 {strides = array<i32>} : memref<20x128xbf16, #tpu.memory_space<vmem>>, vector<16x128xbf16>,
    %c0_73 = arith.constant 0 : index
    %c0_74 = arith.constant 0 : index
    %70 = vector.load %arg6[%c0_73, %c0_74] : memref<20x128xbf16, #tpu.memory_space<vmem>>, vector<16x128xbf16>
    %c1_75 = arith.constant 1 : index
    %c0_76 = arith.constant 0 : index
    %71 = vector.load %arg6[%c1_75, %c0_76] : memref<20x128xbf16, #tpu.memory_space<vmem>>, vector<16x128xbf16>
    %c2_77 = arith.constant 2 : index
    %c0_78 = arith.constant 0 : index
    %72 = vector.load %arg6[%c2_77, %c0_78] : memref<20x128xbf16, #tpu.memory_space<vmem>>, vector<16x128xbf16>
    %c3_79 = arith.constant 3 : index
    %c0_80 = arith.constant 0 : index
    %73 = vector.load %arg6[%c3_79, %c0_80] : memref<20x128xbf16, #tpu.memory_space<vmem>>, vector<16x128xbf16>
    %c4_81 = arith.constant 4 : index
    %c0_82 = arith.constant 0 : index
    %74 = vector.load %arg6[%c4_81, %c0_82] : memref<20x128xbf16, #tpu.memory_space<vmem>>, vector<16x128xbf16>
    %75 = tpu.concatenate %70, %71, %72, %73, %74 in 1 : vector<16x128xbf16>, vector<16x128xbf16>, vector<16x128xbf16>, vector<16x128xbf16>, vector<16x128xbf16> -> vector<16x640xbf16>
    %c3_83 = arith.constant 3 : index
    %c0_84 = arith.constant 0 : index
    %c0_85 = arith.constant 0 : index
    %76 = vector.load %arg2[%c3_83, %c0_84, %c0_85] : memref<5x640x128xbf16, #tpu.memory_space<vmem>>, vector<1x640x128xbf16>
    %77 = vector.shape_cast %76 : vector<1x640x128xbf16> to vector<640x128xbf16>
    %cst_86 = arith.constant dense<0.000000e+00> : vector<16x128xf32>
    %78 = tpu.matmul %75, %77, %cst_86 {dimension_numbers = #tpu.dot_dimension_numbers<[1], [0], [0], [1], [0, 0, 1, 1], [], []>} : vector<16x640xbf16>, vector<640x128xbf16>, vector<16x128xf32> -> vector<16x128xf32>
    %c3_87 = arith.constant 3 : index
    %c0_88 = arith.constant 0 : index
    %c0_89 = arith.constant 0 : index
    %79 = vector.load %arg3[%c3_87, %c0_88, %c0_89] : memref<5x1x128xf32, #tpu.memory_space<vmem>>, vector<1x1x128xf32>
    %80 = vector.shape_cast %79 : vector<1x1x128xf32> to vector<1x128xf32>
    %81 = vector.broadcast %80 : vector<1x128xf32> to vector<16x128xf32>
    %82 = arith.mulf %78, %81 : vector<16x128xf32>
    %c3_90 = arith.constant 3 : index
    %c0_91 = arith.constant 0 : index
    %c0_92 = arith.constant 0 : index
    %83 = vector.load %arg4[%c3_90, %c0_91, %c0_92] : memref<5x1x128xf32, #tpu.memory_space<vmem>>, vector<1x1x128xf32>
    %84 = vector.shape_cast %83 : vector<1x1x128xf32> to vector<1x128xf32>
    %85 = vector.broadcast %84 : vector<1x128xf32> to vector<16x128xf32>
    %86 = arith.addf %82, %85 : vector<16x128xf32>
    %87 = math.tanh %86 : vector<16x128xf32>
    %88 = arith.truncf %87 : vector<16x128xf32> to vector<16x128xbf16>
    %c2_93 = arith.constant 2 : index
    %c0_94 = arith.constant 0 : index
    %89 = vector.load %arg7[%c2_93, %c0_94] : memref<20x128xbf16, #tpu.memory_space<vmem>>, vector<16x128xbf16>
    tpu.vector_store %arg7[%c2_93, %c0_94], %88 {strides = array<i32>} : memref<20x128xbf16, #tpu.memory_space<vmem>>, vector<16x128xbf16>,
    %c0_95 = arith.constant 0 : index
    %c0_96 = arith.constant 0 : index
    %90 = vector.load %arg7[%c0_95, %c0_96] : memref<20x128xbf16, #tpu.memory_space<vmem>>, vector<16x128xbf16>
    %c1_97 = arith.constant 1 : index
    %c0_98 = arith.constant 0 : index
    %91 = vector.load %arg7[%c1_97, %c0_98] : memref<20x128xbf16, #tpu.memory_space<vmem>>, vector<16x128xbf16>
    %c2_99 = arith.constant 2 : index
    %c0_100 = arith.constant 0 : index
    %92 = vector.load %arg7[%c2_99, %c0_100] : memref<20x128xbf16, #tpu.memory_space<vmem>>, vector<16x128xbf16>
    %c3_101 = arith.constant 3 : index
    %c0_102 = arith.constant 0 : index
    %93 = vector.load %arg7[%c3_101, %c0_102] : memref<20x128xbf16, #tpu.memory_space<vmem>>, vector<16x128xbf16>
    %c4_103 = arith.constant 4 : index
    %c0_104 = arith.constant 0 : index
    %94 = vector.load %arg7[%c4_103, %c0_104] : memref<20x128xbf16, #tpu.memory_space<vmem>>, vector<16x128xbf16>
    %95 = tpu.concatenate %90, %91, %92, %93, %94 in 1 : vector<16x128xbf16>, vector<16x128xbf16>, vector<16x128xbf16>, vector<16x128xbf16>, vector<16x128xbf16> -> vector<16x640xbf16>
    %c4_105 = arith.constant 4 : index
    %c0_106 = arith.constant 0 : index
    %c0_107 = arith.constant 0 : index
    %96 = vector.load %arg2[%c4_105, %c0_106, %c0_107] : memref<5x640x128xbf16, #tpu.memory_space<vmem>>, vector<1x640x128xbf16>
    %97 = vector.shape_cast %96 : vector<1x640x128xbf16> to vector<640x128xbf16>
    %cst_108 = arith.constant dense<0.000000e+00> : vector<16x128xf32>
    %98 = tpu.matmul %95, %97, %cst_108 {dimension_numbers = #tpu.dot_dimension_numbers<[1], [0], [0], [1], [0, 0, 1, 1], [], []>} : vector<16x640xbf16>, vector<640x128xbf16>, vector<16x128xf32> -> vector<16x128xf32>
    %c4_109 = arith.constant 4 : index
    %c0_110 = arith.constant 0 : index
    %c0_111 = arith.constant 0 : index
    %99 = vector.load %arg3[%c4_109, %c0_110, %c0_111] : memref<5x1x128xf32, #tpu.memory_space<vmem>>, vector<1x1x128xf32>
    %100 = vector.shape_cast %99 : vector<1x1x128xf32> to vector<1x128xf32>
    %101 = vector.broadcast %100 : vector<1x128xf32> to vector<16x128xf32>
    %102 = arith.mulf %98, %101 : vector<16x128xf32>
    %c4_112 = arith.constant 4 : index
    %c0_113 = arith.constant 0 : index
    %c0_114 = arith.constant 0 : index
    %103 = vector.load %arg4[%c4_112, %c0_113, %c0_114] : memref<5x1x128xf32, #tpu.memory_space<vmem>>, vector<1x1x128xf32>
    %104 = vector.shape_cast %103 : vector<1x1x128xf32> to vector<1x128xf32>
    %105 = vector.broadcast %104 : vector<1x128xf32> to vector<16x128xf32>
    %106 = arith.addf %102, %105 : vector<16x128xf32>
    %c0_115 = arith.constant 0 : index
    %c0_116 = arith.constant 0 : index
    %c0_117 = arith.constant 0 : index
    %107 = vector.load %arg5[%c0_115, %c0_116, %c0_117] : memref<1x16x128xf32, #tpu.memory_space<vmem>>, vector<1x16x128xf32>
    %108 = vector.shape_cast %107 : vector<1x16x128xf32> to vector<16x128xf32>
    %109 = vector.shape_cast %106 : vector<16x128xf32> to vector<1x16x128xf32>
    tpu.vector_store %arg5[%c0_115, %c0_116, %c0_117], %109 {strides = array<i32>} : memref<1x16x128xf32, #tpu.memory_space<vmem>>, vector<1x16x128xf32>,
    return
  }
  func.func @transform_0(%arg0: i32) -> (i32, i32, i32) {
    %c0_i32 = arith.constant 0 : i32
    %c0_i32_0 = arith.constant 0 : i32
    %c0_i32_1 = arith.constant 0 : i32
    return %arg0, %c0_i32, %c0_i32_0 : i32, i32, i32
  }
  func.func @transform_1(%arg0: i32) -> (i32, i32, i32) {
    %c0_i32 = arith.constant 0 : i32
    %c0_i32_0 = arith.constant 0 : i32
    %c0_i32_1 = arith.constant 0 : i32
    %c0_i32_2 = arith.constant 0 : i32
    return %c0_i32, %c0_i32_0, %c0_i32_1 : i32, i32, i32
  }
  func.func @transform_2(%arg0: i32) -> (i32, i32, i32) {
    %c0_i32 = arith.constant 0 : i32
    %c0_i32_0 = arith.constant 0 : i32
    %c0_i32_1 = arith.constant 0 : i32
    %c0_i32_2 = arith.constant 0 : i32
    return %c0_i32, %c0_i32_0, %c0_i32_1 : i32, i32, i32
  }
  func.func @transform_3(%arg0: i32) -> (i32, i32, i32) {
    %c0_i32 = arith.constant 0 : i32
    %c0_i32_0 = arith.constant 0 : i32
    %c0_i32_1 = arith.constant 0 : i32
    %c0_i32_2 = arith.constant 0 : i32
    return %c0_i32, %c0_i32_0, %c0_i32_1 : i32, i32, i32
  }
  func.func @transform_4(%arg0: i32) -> (i32, i32, i32) {
    %c0_i32 = arith.constant 0 : i32
    %c0_i32_0 = arith.constant 0 : i32
    %c0_i32_1 = arith.constant 0 : i32
    return %arg0, %c0_i32, %c0_i32_0 : i32, i32, i32
  }
}

</mosaic_0001>

<llo_original>
// kernel: tpu_custom_call.1
$region0: #{tpu_custom_call.1}
  #allocation0 [shape = 'u32[]', space=smem, size = 0x4, offset = 0x4, fixed_abs, tag = 'smem constant byte address 0x4 - core index']
  #allocation1 [shape = 'u32[144,128]{1,0:T(1,128)}', space=vmem, size = 0x12000, scoped, tag = 'internal scratch']
  #allocation2 [shape = 'bf16[20,128]{1,0:T(8,128)(2,1)}', space=vmem, size = 0x1800, scoped, tag = 'scratch operand']
  #allocation3 [shape = 'bf16[20,128]{1,0:T(8,128)(2,1)}', space=vmem, size = 0x1800, scoped, tag = 'scratch operand']
  %s0 = inlined_call_operand.vmem [shape: bf16[2,20,128], index: 0, kind: input, shape index: {}]
  %s1 = inlined_call_operand.hbm [shape: bf16[5,640,128], index: 1, kind: input, shape index: {}]
  %s2 = inlined_call_operand.vmem [shape: f32[5,1,128], index: 2, kind: input, shape index: {}]
  %s3 = inlined_call_operand.vmem [shape: f32[5,1,128], index: 3, kind: input, shape index: {}]
  %s4 = inlined_call_operand.hbm [shape: f32[2,16,128], index: 4, kind: output, shape index: {}]
  %s5 = sld [smem:[#allocation0]]
  $region53: #{tpu_custom_call.1} parent=0
    _
  %s7 = ssub.s32 1, %s5
  %s8 = scalar_select 0, %s7, %s5
  $region1: #{tpu_custom_call.1} parent=0
    #allocation4 [shape = 'u8[819200]{0}', space=vmem, size = 0xc8000, scoped, tag = 'input window, operand 1, single buffered']
    #allocation5 [shape = 's32[2]{0}', space=sflag, size = 0x8, scoped, tag = 'scoped memory for tpu_custom_call.1']
    #allocation6 [shape = 's32[2]{0}', space=sflag, size = 0x8, scoped, tag = 'scoped memory for tpu_custom_call.1']
    #allocation7 [shape = 'u8[16384]{0}', space=vmem, size = 0x4000, scoped, tag = 'output window, operand 0']
    %9 = vsyncpa [#allocation5], 0
    %10 = vsyncpa [#allocation6], 0
    %s11 = scalar_lea.sflag [#allocation6], 1
    %12 = vsyncpa %s11, 0
    loop: start=0, step=1, limit=4
    $region2: #{tpu_custom_call.1} parent=1 // loop_pre_header
      _
    $region3: #{tpu_custom_call.1} parent=1 // loop_header
      %s14 = sphi 0, %s18
      %p15 = scmp.ge.s32.totalorder %s14, 4
      %s24 = sphi 0, %s26
      %s27 = sphi 0, %s24
      %s28 = sphi 0, %s27
      %s44 = sphi 0, %s28
      %s48 = sphi 0, %s48
      %s50 = sphi 0, %s48
      %s51 = sphi 0, %s50
      %s65 = sphi 0, %s51
      %s69 = sphi 0, %s69
      %s71 = sphi 0, %s69
      %s72 = sphi 0, %s71
      %s86 = sphi 0, %s72
      %s90 = sphi 0, %s90
      %s92 = sphi 0, %s90
      %s93 = sphi 0, %s92
      %s107 = sphi 0, %s93
      %s113 = sphi 0, %s115
      %s116 = sphi 0, %s113
      %s117 = sphi 0, %s116
      %s133 = sphi 0, %s117
    $region4: #{tpu_custom_call.1} parent=1 // loop_header_branch
      %17 = sbr.rel (%p15) target = $region8
    $region5: #{tpu_custom_call.1} parent=1 // loop_body
      %s19 = ssub.s32 %s14, 1
      %s20 = ssub.s32 %s14, 2
      %s21 = sadd.s32 %s14, 1
      %s22 = ssub.s32 %s14, %s21
      %p23 = scmp.eq.s32.totalorder %s22, 0
      %s25 = sadd.s32 %s24, 1
      %s26 = scalar_select %p23, %s24, %s25
      %p29 = pneg %p23
      %p30 = scmp.eq.s32.totalorder %s14, 1
      %p31 = por %p29, %p30
      %p32 = scmp.ne.s32.totalorder %s24, %s27
      %p33 = scmp.eq.s32.totalorder %s14, 0
      %p34 = por %p32, %p33
      %p35 = scmp.ne.s32.totalorder %s24, %s27
      %p36 = scmp.eq.s32.totalorder %s19, 1
      %p37 = por %p35, %p36
      %p38 = scmp.ne.s32.totalorder %s27, %s28
      %p39 = scmp.eq.s32.totalorder %s19, 0
      %p40 = por %p38, %p39
      %p41 = scmp.ne.s32.totalorder %s27, %s28
      %p42 = scmp.eq.s32.totalorder %s20, 1
      %p43 = por %p41, %p42
      %p45 = scmp.ne.s32.totalorder %s28, %s44
      %p46 = scmp.eq.s32.totalorder %s20, 0
      %p47 = por %p45, %p46
      %s49 = sadd.s32 %s48, 1
      %p52 = scmp.eq.s32.totalorder %s14, 1
      %p53 = scmp.ne.s32.totalorder %s48, %s50
      %p54 = scmp.eq.s32.totalorder %s14, 0
      %p55 = por %p53, %p54
      %p56 = scmp.ne.s32.totalorder %s48, %s50
      %p57 = scmp.eq.s32.totalorder %s19, 1
      %p58 = por %p56, %p57
      %p59 = scmp.ne.s32.totalorder %s50, %s51
      %p60 = scmp.eq.s32.totalorder %s19, 0
      %p61 = por %p59, %p60
      %p62 = scmp.ne.s32.totalorder %s50, %s51
      %p63 = scmp.eq.s32.totalorder %s20, 1
      %p64 = por %p62, %p63
      %p66 = scmp.ne.s32.totalorder %s51, %s65
      %p67 = scmp.eq.s32.totalorder %s20, 0
      %p68 = por %p66, %p67
      %s70 = sadd.s32 %s69, 1
      %p73 = scmp.eq.s32.totalorder %s14, 1
      %p74 = scmp.ne.s32.totalorder %s69, %s71
      %p75 = scmp.eq.s32.totalorder %s14, 0
      %p76 = por %p74, %p75
      %p77 = scmp.ne.s32.totalorder %s69, %s71
      %p78 = scmp.eq.s32.totalorder %s19, 1
      %p79 = por %p77, %p78
      %p80 = scmp.ne.s32.totalorder %s71, %s72
      %p81 = scmp.eq.s32.totalorder %s19, 0
      %p82 = por %p80, %p81
      %p83 = scmp.ne.s32.totalorder %s71, %s72
      %p84 = scmp.eq.s32.totalorder %s20, 1
      %p85 = por %p83, %p84
      %p87 = scmp.ne.s32.totalorder %s72, %s86
      %p88 = scmp.eq.s32.totalorder %s20, 0
      %p89 = por %p87, %p88
      %s91 = sadd.s32 %s90, 1
      %p94 = scmp.eq.s32.totalorder %s14, 1
      %p95 = scmp.ne.s32.totalorder %s90, %s92
      %p96 = scmp.eq.s32.totalorder %s14, 0
      %p97 = por %p95, %p96
      %p98 = scmp.ne.s32.totalorder %s90, %s92
      %p99 = scmp.eq.s32.totalorder %s19, 1
      %p100 = por %p98, %p99
      %p101 = scmp.ne.s32.totalorder %s92, %s93
      %p102 = scmp.eq.s32.totalorder %s19, 0
      %p103 = por %p101, %p102
      %p104 = scmp.ne.s32.totalorder %s92, %s93
      %p105 = scmp.eq.s32.totalorder %s20, 1
      %p106 = por %p104, %p105
      %p108 = scmp.ne.s32.totalorder %s93, %s107
      %p109 = scmp.eq.s32.totalorder %s20, 0
      %p110 = por %p108, %p109
      %s111 = ssub.s32 %s14, %s21
      %p112 = scmp.eq.s32.totalorder %s111, 0
      %s114 = sadd.s32 %s113, 1
      %s115 = scalar_select %p112, %s113, %s114
      %p118 = pneg %p112
      %p119 = scmp.eq.s32.totalorder %s14, 1
      %p120 = por %p118, %p119
      %p121 = scmp.ne.s32.totalorder %s113, %s116
      %p122 = scmp.eq.s32.totalorder %s14, 0
      %p123 = por %p121, %p122
      %p124 = scmp.ne.s32.totalorder %s113, %s116
      %p125 = scmp.eq.s32.totalorder %s19, 1
      %p126 = por %p124, %p125
      %p127 = scmp.ne.s32.totalorder %s116, %s117
      %p128 = scmp.eq.s32.totalorder %s19, 0
      %p129 = por %p127, %p128
      %p130 = scmp.ne.s32.totalorder %s116, %s117
      %p131 = scmp.eq.s32.totalorder %s20, 1
      %p132 = por %p130, %p131
      %p134 = scmp.ne.s32.totalorder %s117, %s133
      %p135 = scmp.eq.s32.totalorder %s20, 0
      %p136 = por %p134, %p135
      %p137 = scmp.le.s32.totalorder 1, %s14
      %p138 = scmp.lt.s32.totalorder %s14, 3
      %p139 = pnand %p137, %p138
      %p140 = pneg %p139
      // Predicated region
      $region9: #{tpu_custom_call.1} parent=5 // pred_check
        _
      $region10: #{tpu_custom_call.1} parent=5 // pred_check_branch
        %142 = sbr.rel (%p139) target = $region12
      $region11: #{tpu_custom_call.1} parent=5 // pred_region
        %s143 = ssub.s32 %s14, 1
        // Predicated region
        $region13: #{tpu_custom_call.1} parent=11 // pred_check
          %p144 = pneg %p61
        $region14: #{tpu_custom_call.1} parent=11 // pred_check_branch
          %146 = sbr.rel (%p144) target = $region16
        $region15: #{tpu_custom_call.1} parent=11 // pred_region
          %s148 = ssub.s32 25600, 25600
          %149 = vsyncadd [#allocation5], %s148
          %s150 = sshll.u32 [#allocation4], 4
          %s151 = int_to_ptr.vmem [resolvable:$true] %s150
          %156 = dma.hbm_to_vmem [thread:$0]  %s1, 25600, %s151, [#allocation5], 64, 64, 4
        $region16: #{tpu_custom_call.1} parent=11 // pred_fallthru
          _
        // Predicated region
        $region17: #{tpu_custom_call.1} parent=11 // pred_check
          %p157 = pneg %p82
        $region18: #{tpu_custom_call.1} parent=11 // pred_check_branch
          %159 = sbr.rel (%p157) target = $region20
        $region19: #{tpu_custom_call.1} parent=11 // pred_region
          _
        $region20: #{tpu_custom_call.1} parent=11 // pred_fallthru
          _
        // Predicated region
        $region21: #{tpu_custom_call.1} parent=11 // pred_check
          %p160 = pneg %p103
        $region22: #{tpu_custom_call.1} parent=11 // pred_check_branch
          %162 = sbr.rel (%p160) target = $region24
        $region23: #{tpu_custom_call.1} parent=11 // pred_region
          _
        $region24: #{tpu_custom_call.1} parent=11 // pred_fallthru
          _
      $region12: #{tpu_custom_call.1} parent=5 // pred_fallthru
        _
      %p163 = scmp.lt.s32.totalorder %s14, 2
      // Predicated region
      $region25: #{tpu_custom_call.1} parent=5 // pred_check
        %p164 = pneg %p163
      $region26: #{tpu_custom_call.1} parent=5 // pred_check_branch
        %166 = sbr.rel (%p164) target = $region28
      $region27: #{tpu_custom_call.1} parent=5 // pred_region
        // Predicated region
        $region29: #{tpu_custom_call.1} parent=27 // pred_check
          %p167 = pneg %p34
        $region30: #{tpu_custom_call.1} parent=27 // pred_check_branch
          %169 = sbr.rel (%p167) target = $region32
        $region31: #{tpu_custom_call.1} parent=27 // pred_region
          %p170 = scmp.lt.s32.totalorder %s14, 1
          %s171 = scalar_select %p170, %s14, 1
          %s172 = smul.addr %s171, 3
          %s173 = smul.addr %s172, 4
          %s174 = scalar_lea.vmem %s0, %s173
        $region32: #{tpu_custom_call.1} parent=27 // pred_fallthru
          _
      $region28: #{tpu_custom_call.1} parent=5 // pred_fallthru
        _
      %p175 = scmp.le.s32.totalorder 1, %s14
      %p176 = scmp.lt.s32.totalorder %s14, 3
      %p177 = pnand %p175, %p176
      %p178 = pneg %p177
      // Predicated region
      $region33: #{tpu_custom_call.1} parent=5 // pred_check
        _
      $region34: #{tpu_custom_call.1} parent=5 // pred_check_branch
        %180 = sbr.rel (%p177) target = $region36
      $region35: #{tpu_custom_call.1} parent=5 // pred_region
        %s181 = ssub.s32 %s14, 1
        // Predicated region
        $region37: #{tpu_custom_call.1} parent=35 // pred_check
          %p182 = pneg %p61
        $region38: #{tpu_custom_call.1} parent=35 // pred_check_branch
          %184 = sbr.rel (%p182) target = $region40
        $region39: #{tpu_custom_call.1} parent=35 // pred_region
          %185 = dma.done [#allocation5], 25600
        $region40: #{tpu_custom_call.1} parent=35 // pred_fallthru
          _
        %p186 = scmp.lt.s32.totalorder %s19, 1
        %s187 = scalar_select %p186, %s19, 1
        %s188 = smul.addr %s187, 3
        %s189 = smul.addr %s188, 4
        %s190 = scalar_lea.vmem %s0, %s189
        %p191 = pneg %p40
        %p192 = pneg %p37
        %p193 = pneg %p61
        %p194 = pneg %p58
        %p195 = pneg %p82
        %p196 = pneg %p79
        %p197 = pneg %p103
        %p198 = pneg %p100
        %p199 = pneg %p129
        %p200 = pneg %p126
        %s201 = sand.u32 %s116, 1
        %s202 = scalar_lea.sflag [#allocation6], %s201
        %s203 = sand.u32 %s116, 1
        %s204 = smul.addr %s203, 16
        %s205 = scalar_lea.vmem [#allocation7], %s204
        %p206 = scmp.lt.s32.totalorder %s19, 1
        %s207 = scalar_select %p206, %s19, 1
        %s208 = smul.addr %s207, 3
        %s209 = smul.addr %s208, 4
        %s210 = scalar_lea.vmem %s0, %s209
        %212 = vst [vmem:[#allocation2] sm:$0x1] 0
        %213 = vst [vmem:[#allocation2 + $0x8] sm:$0x2] 0
        %214 = vst [vmem:[#allocation3] sm:$0x1] 0
        %215 = vst [vmem:[#allocation3 + $0x8] sm:$0x2] 0
        %v216 = vld [vmem:[%s210] sm:$0xf]
        %v217 = vld [vmem:[%s210 + $0x4] sm:$0xf]
        %v218 = vld [vmem:[%s210 + $0x8] sm:$0x1]
        %v219 = vld [vmem:[%s210] sm:$0xe]
        %v220 = vld [vmem:[%s210 + $0x8] sm:$0x3]
        %v221 = vld [vmem:[%s210] sm:$0xc]
        %v224 = vunpack.c.l.b16 %v216
        %v225 = vunpack.c.l.b16 %v217
        %v226 = vpack.c.b16 %v225, %v224
        %v229 = vunpack.c.l.b16 %v218
        %v230 = vpack.c.b16 %v229, %v229
        %vm231 = vsmask.f32 7424
        %v233 = vshrl.u32 %v226, 16
        %v235 = vshll.u32 %v226, 16
        %v237 = vrot.slane %v235, 1
        %v238 = vor.u32 %v233, %v237
        %v240 = vshll.u32 %v230, 16
        %v242 = vrot.slane %v240, 1
        %v243 = vsel %vm231, %v238, %v242
        %v246 = vunpack.c.l.b16 %v219
        %v247 = vpack.c.b16 %v225, %v246
        %vm248 = vcmask 1046528
        %v249 = vrot.slane %v247, 1
        %v250 = vrot.slane %v230, 1
        %v251 = vsel %vm248, %v249, %v250
        %v254 = vunpack.c.l.b16 %v220
        %v255 = vpack.c.b16 %v254, %v254
        %vm256 = vsmask.f32 6400
        %v258 = vshrl.u32 %v247, 16
        %v260 = vrot.slane %v258, 1
        %v261 = vshll.u32 %v247, 16
        %v263 = vrot.slane %v261, 2
        %v264 = vor.u32 %v260, %v263
        %v266 = vshrl.u32 %v255, 16
        %v268 = vrot.slane %v266, 1
        %v269 = vshll.u32 %v255, 16
        %v271 = vrot.slane %v269, 2
        %v272 = vor.u32 %v268, %v271
        %v273 = vsel %vm256, %v264, %v272
        %v276 = vunpack.c.l.b16 %v221
        %v277 = vpack.c.b16 %v225, %v276
        %vm278 = vcmask 1045504
        %v279 = vrot.slane %v277, 2
        %v280 = vrot.slane %v255, 2
        %v281 = vsel %vm278, %v279, %v280
        %v283 = vld [vmem:[#allocation4] sm:$0xf]
        %v284 = vld [vmem:[#allocation4 + $0x4] sm:$0xf]
        %v285 = vld [vmem:[#allocation4 + $0x8] sm:$0xf]
        %v286 = vld [vmem:[#allocation4 + $0xc] sm:$0xf]
        %v287 = vld [vmem:[#allocation4 + $0x10] sm:$0xf]
        %v288 = vld [vmem:[#allocation4 + $0x14] sm:$0xf]
        %v289 = vld [vmem:[#allocation4 + $0x18] sm:$0xf]
        %v290 = vld [vmem:[#allocation4 + $0x1c] sm:$0xf]
        %v291 = vld [vmem:[#allocation4 + $0x20] sm:$0xf]
        %v292 = vld [vmem:[#allocation4 + $0x24] sm:$0xf]
        %v293 = vld [vmem:[#allocation4 + $0x28] sm:$0xf]
        %v294 = vld [vmem:[#allocation4 + $0x2c] sm:$0xf]
        %v295 = vld [vmem:[#allocation4 + $0x30] sm:$0xf]
        %v296 = vld [vmem:[#allocation4 + $0x34] sm:$0xf]
        %v297 = vld [vmem:[#allocation4 + $0x38] sm:$0xf]
        %v298 = vld [vmem:[#allocation4 + $0x3c] sm:$0xf]
        %v299 = vld [vmem:[#allocation4 + $0x40] sm:$0xf]
        %v300 = vld [vmem:[#allocation4 + $0x44] sm:$0xf]
        %v301 = vld [vmem:[#allocation4 + $0x48] sm:$0xf]
        %v302 = vld [vmem:[#allocation4 + $0x4c] sm:$0xf]
        %v303 = vld [vmem:[#allocation4 + $0x50] sm:$0xf]
        %v304 = vld [vmem:[#allocation4 + $0x54] sm:$0xf]
        %v305 = vld [vmem:[#allocation4 + $0x58] sm:$0xf]
        %v306 = vld [vmem:[#allocation4 + $0x5c] sm:$0xf]
        %v307 = vld [vmem:[#allocation4 + $0x60] sm:$0xf]
        %v308 = vld [vmem:[#allocation4 + $0x64] sm:$0xf]
        %v309 = vld [vmem:[#allocation4 + $0x68] sm:$0xf]
        %v310 = vld [vmem:[#allocation4 + $0x6c] sm:$0xf]
        %v311 = vld [vmem:[#allocation4 + $0x70] sm:$0xf]
        %v312 = vld [vmem:[#allocation4 + $0x74] sm:$0xf]
        %v313 = vld [vmem:[#allocation4 + $0x78] sm:$0xf]
        %v314 = vld [vmem:[#allocation4 + $0x7c] sm:$0xf]
        %v315 = vld [vmem:[#allocation4 + $0x80] sm:$0xf]
        %v316 = vld [vmem:[#allocation4 + $0x84] sm:$0xf]
        %v317 = vld [vmem:[#allocation4 + $0x88] sm:$0xf]
        %v318 = vld [vmem:[#allocation4 + $0x8c] sm:$0xf]
        %v319 = vld [vmem:[#allocation4 + $0x90] sm:$0xf]
        %v320 = vld [vmem:[#allocation4 + $0x94] sm:$0xf]
        %v321 = vld [vmem:[#allocation4 + $0x98] sm:$0xf]
        %v322 = vld [vmem:[#allocation4 + $0x9c] sm:$0xf]
        %v323 = vld [vmem:[#allocation4 + $0xa0] sm:$0xf]
        %v324 = vld [vmem:[#allocation4 + $0xa4] sm:$0xf]
        %v325 = vld [vmem:[#allocation4 + $0xa8] sm:$0xf]
        %v326 = vld [vmem:[#allocation4 + $0xac] sm:$0xf]
        %v327 = vld [vmem:[#allocation4 + $0xb0] sm:$0xf]
        %v328 = vld [vmem:[#allocation4 + $0xb4] sm:$0xf]
        %v329 = vld [vmem:[#allocation4 + $0xb8] sm:$0xf]
        %v330 = vld [vmem:[#allocation4 + $0xbc] sm:$0xf]
        %v331 = vld [vmem:[#allocation4 + $0xc0] sm:$0xf]
        %v332 = vld [vmem:[#allocation4 + $0xc4] sm:$0xf]
        %v333 = vld [vmem:[#allocation4 + $0xc8] sm:$0xf]
        %v334 = vld [vmem:[#allocation4 + $0xcc] sm:$0xf]
        %v335 = vld [vmem:[#allocation4 + $0xd0] sm:$0xf]
        %v336 = vld [vmem:[#allocation4 + $0xd4] sm:$0xf]
        %v337 = vld [vmem:[#allocation4 + $0xd8] sm:$0xf]
        %v338 = vld [vmem:[#allocation4 + $0xdc] sm:$0xf]
        %v339 = vld [vmem:[#allocation4 + $0xe0] sm:$0xf]
        %v340 = vld [vmem:[#allocation4 + $0xe4] sm:$0xf]
        %v341 = vld [vmem:[#allocation4 + $0xe8] sm:$0xf]
        %v342 = vld [vmem:[#allocation4 + $0xec] sm:$0xf]
        %v343 = vld [vmem:[#allocation4 + $0xf0] sm:$0xf]
        %v344 = vld [vmem:[#allocation4 + $0xf4] sm:$0xf]
        %v345 = vld [vmem:[#allocation4 + $0xf8] sm:$0xf]
        %v346 = vld [vmem:[#allocation4 + $0xfc] sm:$0xf]
        %v347 = vld [vmem:[#allocation4 + $0x100] sm:$0xf]
        %v348 = vld [vmem:[#allocation4 + $0x104] sm:$0xf]
        %v349 = vld [vmem:[#allocation4 + $0x108] sm:$0xf]
        %v350 = vld [vmem:[#allocation4 + $0x10c] sm:$0xf]
        %v351 = vld [vmem:[#allocation4 + $0x110] sm:$0xf]
        %v352 = vld [vmem:[#allocation4 + $0x114] sm:$0xf]
        %v353 = vld [vmem:[#allocation4 + $0x118] sm:$0xf]
        %v354 = vld [vmem:[#allocation4 + $0x11c] sm:$0xf]
        %v355 = vld [vmem:[#allocation4 + $0x120] sm:$0xf]
        %v356 = vld [vmem:[#allocation4 + $0x124] sm:$0xf]
        %v357 = vld [vmem:[#allocation4 + $0x128] sm:$0xf]
        %v358 = vld [vmem:[#allocation4 + $0x12c] sm:$0xf]
        %v359 = vld [vmem:[#allocation4 + $0x130] sm:$0xf]
        %v360 = vld [vmem:[#allocation4 + $0x134] sm:$0xf]
        %v361 = vld [vmem:[#allocation4 + $0x138] sm:$0xf]
        %v362 = vld [vmem:[#allocation4 + $0x13c] sm:$0xf]
        %v443 = vunpack.c.l.b16 %v283
        %v444 = vunpack.c.l.b16 %v284
        %v445 = vunpack.c.l.b16 %v285
        %v446 = vunpack.c.l.b16 %v286
        %v447 = vunpack.c.l.b16 %v287
        %v448 = vunpack.c.l.b16 %v288
        %v449 = vunpack.c.l.b16 %v289
        %v450 = vunpack.c.l.b16 %v290
        %v451 = vunpack.c.l.b16 %v291
        %v452 = vunpack.c.l.b16 %v292
        %v453 = vunpack.c.l.b16 %v293
        %v454 = vunpack.c.l.b16 %v294
        %v455 = vunpack.c.l.b16 %v295
        %v456 = vunpack.c.l.b16 %v296
        %v457 = vunpack.c.l.b16 %v297
        %v458 = vunpack.c.l.b16 %v298
        %v459 = vunpack.c.l.b16 %v299
        %v460 = vunpack.c.l.b16 %v300
        %v461 = vunpack.c.l.b16 %v301
        %v462 = vunpack.c.l.b16 %v302
        %v463 = vunpack.c.l.b16 %v303
        %v464 = vunpack.c.l.b16 %v304
        %v465 = vunpack.c.l.b16 %v305
        %v466 = vunpack.c.l.b16 %v306
        %v467 = vunpack.c.l.b16 %v307
        %v468 = vunpack.c.l.b16 %v308
        %v469 = vunpack.c.l.b16 %v309
        %v470 = vunpack.c.l.b16 %v310
        %v471 = vunpack.c.l.b16 %v311
        %v472 = vunpack.c.l.b16 %v312
        %v473 = vunpack.c.l.b16 %v313
        %v474 = vunpack.c.l.b16 %v314
        %v475 = vunpack.c.l.b16 %v315
        %v476 = vunpack.c.l.b16 %v316
        %v477 = vunpack.c.l.b16 %v317
        %v478 = vunpack.c.l.b16 %v318
        %v479 = vunpack.c.l.b16 %v319
        %v480 = vunpack.c.l.b16 %v320
        %v481 = vunpack.c.l.b16 %v321
        %v482 = vunpack.c.l.b16 %v322
        %v483 = vunpack.c.l.b16 %v323
        %v484 = vunpack.c.l.b16 %v324
        %v485 = vunpack.c.l.b16 %v325
        %v486 = vunpack.c.l.b16 %v326
        %v487 = vunpack.c.l.b16 %v327
        %v488 = vunpack.c.l.b16 %v328
        %v489 = vunpack.c.l.b16 %v329
        %v490 = vunpack.c.l.b16 %v330
        %v491 = vunpack.c.l.b16 %v331
        %v492 = vunpack.c.l.b16 %v332
        %v493 = vunpack.c.l.b16 %v333
        %v494 = vunpack.c.l.b16 %v334
        %v495 = vunpack.c.l.b16 %v335
        %v496 = vunpack.c.l.b16 %v336
        %v497 = vunpack.c.l.b16 %v337
        %v498 = vunpack.c.l.b16 %v338
        %v499 = vunpack.c.l.b16 %v339
        %v500 = vunpack.c.l.b16 %v340
        %v501 = vunpack.c.l.b16 %v341
        %v502 = vunpack.c.l.b16 %v342
        %v503 = vunpack.c.l.b16 %v343
        %v504 = vunpack.c.l.b16 %v344
        %v505 = vunpack.c.l.b16 %v345
        %v506 = vunpack.c.l.b16 %v346
        %v507 = vunpack.c.l.b16 %v347
        %v508 = vunpack.c.l.b16 %v348
        %v509 = vunpack.c.l.b16 %v349
        %v510 = vunpack.c.l.b16 %v350
        %v511 = vunpack.c.l.b16 %v351
        %v512 = vunpack.c.l.b16 %v352
        %v513 = vunpack.c.l.b16 %v353
        %v514 = vunpack.c.l.b16 %v354
        %v515 = vunpack.c.l.b16 %v355
        %v516 = vunpack.c.l.b16 %v356
        %v517 = vunpack.c.l.b16 %v357
        %v518 = vunpack.c.l.b16 %v358
        %v519 = vunpack.c.l.b16 %v359
        %v520 = vunpack.c.l.b16 %v360
        %v521 = vunpack.c.l.b16 %v361
        %v522 = vunpack.c.l.b16 %v362
        %v523 = vpack.c.b16 %v444, %v443
        %v524 = vpack.c.b16 %v446, %v445
        %v525 = vpack.c.b16 %v448, %v447
        %v526 = vpack.c.b16 %v450, %v449
        %v527 = vpack.c.b16 %v452, %v451
        %v528 = vpack.c.b16 %v454, %v453
        %v529 = vpack.c.b16 %v456, %v455
        %v530 = vpack.c.b16 %v458, %v457
        %v531 = vpack.c.b16 %v460, %v459
        %v532 = vpack.c.b16 %v462, %v461
        %v533 = vpack.c.b16 %v464, %v463
        %v534 = vpack.c.b16 %v466, %v465
        %v535 = vpack.c.b16 %v468, %v467
        %v536 = vpack.c.b16 %v470, %v469
        %v537 = vpack.c.b16 %v472, %v471
        %v538 = vpack.c.b16 %v474, %v473
        %v539 = vpack.c.b16 %v476, %v475
        %v540 = vpack.c.b16 %v478, %v477
        %v541 = vpack.c.b16 %v480, %v479
        %v542 = vpack.c.b16 %v482, %v481
        %v543 = vpack.c.b16 %v484, %v483
        %v544 = vpack.c.b16 %v486, %v485
        %v545 = vpack.c.b16 %v488, %v487
        %v546 = vpack.c.b16 %v490, %v489
        %v547 = vpack.c.b16 %v492, %v491
        %v548 = vpack.c.b16 %v494, %v493
        %v549 = vpack.c.b16 %v496, %v495
        %v550 = vpack.c.b16 %v498, %v497
        %v551 = vpack.c.b16 %v500, %v499
        %v552 = vpack.c.b16 %v502, %v501
        %v553 = vpack.c.b16 %v504, %v503
        %v554 = vpack.c.b16 %v506, %v505
        %v555 = vpack.c.b16 %v508, %v507
        %v556 = vpack.c.b16 %v510, %v509
        %v557 = vpack.c.b16 %v512, %v511
        %v558 = vpack.c.b16 %v514, %v513
        %v559 = vpack.c.b16 %v516, %v515
        %v560 = vpack.c.b16 %v518, %v517
        %v561 = vpack.c.b16 %v520, %v519
        %v562 = vpack.c.b16 %v522, %v521
        %603 = vmatprep.subr.bf16.mxu0 0
        %604 = vmatpush1.bf16.msra.mxu0 %v530
        %605 = vmatprep.subr.bf16.mxu0 0
        %606 = vmatpush1.bf16.msra.mxu0 %v529
        %607 = vmatprep.subr.bf16.mxu0 0
        %608 = vmatpush1.bf16.msra.mxu0 %v528
        %609 = vmatprep.subr.bf16.mxu0 0
        %610 = vmatpush1.bf16.msra.mxu0 %v527
        %611 = vmatprep.subr.bf16.mxu0 0
        %612 = vmatpush1.bf16.msra.mxu0 %v526
        %613 = vmatprep.subr.bf16.mxu0 0
        %614 = vmatpush1.bf16.msra.mxu0 %v525
        %615 = vmatprep.subr.bf16.mxu0 0
        %616 = vmatpush1.bf16.msra.mxu0 %v524
        %617 = vmatprep.subr.bf16.mxu0 0
        %618 = vmatpush1.bf16.msra.mxu0 %v523
        %619 = vmatprep.subr.bf16.mxu0 0
        %620 = vmatpush2.bf16.msra.mxu0 %v538
        %621 = vmatprep.subr.bf16.mxu0 0
        %622 = vmatpush2.bf16.msra.mxu0 %v537
        %623 = vmatprep.subr.bf16.mxu0 0
        %624 = vmatpush2.bf16.msra.mxu0 %v536
        %625 = vmatprep.subr.bf16.mxu0 0
        %626 = vmatpush2.bf16.msra.mxu0 %v535
        %627 = vmatprep.subr.bf16.mxu0 0
        %628 = vmatpush2.bf16.msra.mxu0 %v534
        %629 = vmatprep.subr.bf16.mxu0 0
        %630 = vmatpush2.bf16.msra.mxu0 %v533
        %631 = vmatprep.subr.bf16.mxu0 0
        %632 = vmatpush2.bf16.msra.mxu0 %v532
        %633 = vmatprep.subr.bf16.mxu0 0
        %634 = vmatpush2.bf16.msra.mxu0 %v531
        %635 = vmatprep.mubr.bf16.mxu0 %v243
        %636 = vmatmul.mubr.bf16.gmra.mxu0 %v226
        %v637 = vpop.f32.mrf.mxu0
        %v638 = vadd.f32 0.0, %v637
        %v639 = vpop.f32.mrf.mxu0
        %v640 = vpop.f32.mrf.mxu0
        %v641 = vadd.f32 0.0, %v640
        %v642 = vpop.f32.mrf.mxu0
        %643 = vdwg.mxu0
        %644 = vmatprep.subr.bf16.mxu0 0
        %645 = vmatpush1.bf16.msra.mxu0 %v546
        %646 = vmatprep.subr.bf16.mxu0 0
        %647 = vmatpush1.bf16.msra.mxu0 %v545
        %648 = vmatprep.subr.bf16.mxu0 0
        %649 = vmatpush1.bf16.msra.mxu0 %v544
        %650 = vmatprep.subr.bf16.mxu0 0
        %651 = vmatpush1.bf16.msra.mxu0 %v543
        %652 = vmatprep.subr.bf16.mxu0 0
        %653 = vmatpush1.bf16.msra.mxu0 %v542
        %654 = vmatprep.subr.bf16.mxu0 0
        %655 = vmatpush1.bf16.msra.mxu0 %v541
        %656 = vmatprep.subr.bf16.mxu0 0
        %657 = vmatpush1.bf16.msra.mxu0 %v540
        %658 = vmatprep.subr.bf16.mxu0 0
        %659 = vmatpush1.bf16.msra.mxu0 %v539
        %660 = vmatprep.subr.bf16.mxu0 0
        %661 = vmatpush2.bf16.msra.mxu0 %v554
        %662 = vmatprep.subr.bf16.mxu0 0
        %663 = vmatpush2.bf16.msra.mxu0 %v553
        %664 = vmatprep.subr.bf16.mxu0 0
        %665 = vmatpush2.bf16.msra.mxu0 %v552
        %666 = vmatprep.subr.bf16.mxu0 0
        %667 = vmatpush2.bf16.msra.mxu0 %v551
        %668 = vmatprep.subr.bf16.mxu0 0
        %669 = vmatpush2.bf16.msra.mxu0 %v550
        %670 = vmatprep.subr.bf16.mxu0 0
        %671 = vmatpush2.bf16.msra.mxu0 %v549
        %672 = vmatprep.subr.bf16.mxu0 0
        %673 = vmatpush2.bf16.msra.mxu0 %v548
        %674 = vmatprep.subr.bf16.mxu0 0
        %675 = vmatpush2.bf16.msra.mxu0 %v547
        %676 = vmatprep.mubr.bf16.mxu0 %v273
        %677 = vmatmul.mubr.bf16.gmra.mxu0 %v251
        %v678 = vpop.f32.mrf.mxu0
        %v679 = vadd.f32 %v638, %v678
        %v680 = vpop.f32.mrf.mxu0
        %v681 = vpop.f32.mrf.mxu0
        %v682 = vadd.f32 %v641, %v681
        %v683 = vpop.f32.mrf.mxu0
        %684 = vdwg.mxu0
        %685 = vmatprep.subr.bf16.mxu0 0
        %686 = vmatpush1.bf16.msra.mxu0 %v562
        %687 = vmatprep.subr.bf16.mxu0 0
        %688 = vmatpush1.bf16.msra.mxu0 %v561
        %689 = vmatprep.subr.bf16.mxu0 0
        %690 = vmatpush1.bf16.msra.mxu0 %v560
        %691 = vmatprep.subr.bf16.mxu0 0
        %692 = vmatpush1.bf16.msra.mxu0 %v559
        %693 = vmatprep.subr.bf16.mxu0 0
        %694 = vmatpush1.bf16.msra.mxu0 %v558
        %695 = vmatprep.subr.bf16.mxu0 0
        %696 = vmatpush1.bf16.msra.mxu0 %v557
        %697 = vmatprep.subr.bf16.mxu0 0
        %698 = vmatpush1.bf16.msra.mxu0 %v556
        %699 = vmatprep.subr.bf16.mxu0 0
        %700 = vmatpush1.bf16.msra.mxu0 %v555
        %701 = vmatprep.subr.bf16.mxu0 0
        %702 = vmatpush2.bf16.msra.mxu0 0
        %703 = vmatprep.subr.bf16.mxu0 0
        %704 = vmatpush2.bf16.msra.mxu0 0
        %705 = vmatprep.subr.bf16.mxu0 0
        %706 = vmatpush2.bf16.msra.mxu0 0
        %707 = vmatprep.subr.bf16.mxu0 0
        %708 = vmatpush2.bf16.msra.mxu0 0
        %709 = vmatprep.subr.bf16.mxu0 0
        %710 = vmatpush2.bf16.msra.mxu0 0
        %711 = vmatprep.subr.bf16.mxu0 0
        %712 = vmatpush2.bf16.msra.mxu0 0
        %713 = vmatprep.subr.bf16.mxu0 0
        %714 = vmatpush2.bf16.msra.mxu0 0
        %715 = vmatprep.subr.bf16.mxu0 0
        %716 = vmatpush2.bf16.msra.mxu0 0
        %717 = vmatprep.mubr.bf16.mxu0 0
        %718 = vmatmul.mubr.bf16.gmra.mxu0 %v281
        %v719 = vpop.f32.mrf.mxu0
        %v720 = vadd.f32 %v679, %v719
        %v721 = vpop.f32.mrf.mxu0
        %v722 = vpop.f32.mrf.mxu0
        %v723 = vadd.f32 %v682, %v722
        %v724 = vpop.f32.mrf.mxu0
        %725 = vdwg.mxu0
        %v726 = vld [vmem:[%s2] sm:$0x1]
        %v728 = vlaneseq
        %v729 = vshrl.u32 %v728, 7
        %v730 = vsub.s32 0, %v729
        %v731 = vrot.slane %v726, %v730
        %v733 = vmul.f32 %v720, %v731
        %v734 = vmul.f32 %v723, %v731
        %v735 = vld [vmem:[%s3] sm:$0x1]
        %v737 = vlaneseq
        %v738 = vshrl.u32 %v737, 7
        %v739 = vsub.s32 0, %v738
        %v740 = vrot.slane %v735, %v739
        %v742 = vadd.f32 %v733, %v740
        %v743 = vadd.f32 %v734, %v740
        %v744 = vtanh.pop %v742
        %v745 = vtanh.pop %v743
        %v746 = vpack.c.bf16 %v745, %v744
        %v748 = vunpack.c.l.b16 %v746
        %v749 = vunpack.c.h.b16 %v746
        %v750 = vpack.c.b16 %v748, %v748
        %v751 = vpack.c.b16 %v749, %v749
        %vm752 = vcmask 1040384
        %vm753 = vcmask 1044484
        %vm754 = vmor %vm752, %vm753
        %v755 = vrot.slane %v750, 7
        %v756 = vrot.slane %v755, 4
        %v757 = vrot.slane %v751, 7
        %v758 = vsel %vm754, %v756, %v757
        %v759 = vrot.slane %v757, 4
        %763 = vst [vmem:[#allocation2] sm:$0xe] %v755
        %764 = vst [vmem:[#allocation2 + $0x4] sm:$0xf] %v758
        %765 = vst [vmem:[#allocation2 + $0x8] sm:$0x1] %v759
        %v766 = vld [vmem:[#allocation2] sm:$0xf]
        %v767 = vld [vmem:[#allocation2 + $0x4] sm:$0xf]
        %v768 = vld [vmem:[#allocation2 + $0x8] sm:$0x1]
        %v769 = vld [vmem:[#allocation2] sm:$0xe]
        %v770 = vld [vmem:[#allocation2 + $0x8] sm:$0x3]
        %v771 = vld [vmem:[#allocation2] sm:$0xc]
        %v774 = vunpack.c.l.b16 %v766
        %v775 = vunpack.c.l.b16 %v767
        %v776 = vpack.c.b16 %v775, %v774
        %v779 = vunpack.c.l.b16 %v768
        %v780 = vpack.c.b16 %v779, %v779
        %v782 = vshrl.u32 %v776, 16
        %v784 = vshll.u32 %v776, 16
        %v786 = vrot.slane %v784, 1
        %v787 = vor.u32 %v782, %v786
        %v789 = vshll.u32 %v780, 16
        %v791 = vrot.slane %v789, 1
        %v792 = vsel %vm231, %v787, %v791
        %v795 = vunpack.c.l.b16 %v769
        %v796 = vpack.c.b16 %v775, %v795
        %v797 = vrot.slane %v796, 1
        %v798 = vrot.slane %v780, 1
        %v799 = vsel %vm248, %v797, %v798
        %v802 = vunpack.c.l.b16 %v770
        %v803 = vpack.c.b16 %v802, %v802
        %v805 = vshrl.u32 %v796, 16
        %v807 = vrot.slane %v805, 1
        %v808 = vshll.u32 %v796, 16
        %v810 = vrot.slane %v808, 2
        %v811 = vor.u32 %v807, %v810
        %v813 = vshrl.u32 %v803, 16
        %v815 = vrot.slane %v813, 1
        %v816 = vshll.u32 %v803, 16
        %v818 = vrot.slane %v816, 2
        %v819 = vor.u32 %v815, %v818
        %v820 = vsel %vm256, %v811, %v819
        %v823 = vunpack.c.l.b16 %v771
        %v824 = vpack.c.b16 %v775, %v823
        %v825 = vrot.slane %v824, 2
        %v826 = vrot.slane %v803, 2
        %v827 = vsel %vm278, %v825, %v826
        %s829 = scalar_lea.vmem [#allocation4], 320
        %v830 = vld [vmem:[%s829] sm:$0xf]
        %v831 = vld [vmem:[%s829 + $0x4] sm:$0xf]
        %v832 = vld [vmem:[%s829 + $0x8] sm:$0xf]
        %v833 = vld [vmem:[%s829 + $0xc] sm:$0xf]
        %v834 = vld [vmem:[%s829 + $0x10] sm:$0xf]
        %v835 = vld [vmem:[%s829 + $0x14] sm:$0xf]
        %v836 = vld [vmem:[%s829 + $0x18] sm:$0xf]
        %v837 = vld [vmem:[%s829 + $0x1c] sm:$0xf]
        %v838 = vld [vmem:[%s829 + $0x20] sm:$0xf]
        %v839 = vld [vmem:[%s829 + $0x24] sm:$0xf]
        %v840 = vld [vmem:[%s829 + $0x28] sm:$0xf]
        %v841 = vld [vmem:[%s829 + $0x2c] sm:$0xf]
        %v842 = vld [vmem:[%s829 + $0x30] sm:$0xf]
        %v843 = vld [vmem:[%s829 + $0x34] sm:$0xf]
        %v844 = vld [vmem:[%s829 + $0x38] sm:$0xf]
        %v845 = vld [vmem:[%s829 + $0x3c] sm:$0xf]
        %v846 = vld [vmem:[%s829 + $0x40] sm:$0xf]
        %v847 = vld [vmem:[%s829 + $0x44] sm:$0xf]
        %v848 = vld [vmem:[%s829 + $0x48] sm:$0xf]
        %v849 = vld [vmem:[%s829 + $0x4c] sm:$0xf]
        %v850 = vld [vmem:[%s829 + $0x50] sm:$0xf]
        %v851 = vld [vmem:[%s829 + $0x54] sm:$0xf]
        %v852 = vld [vmem:[%s829 + $0x58] sm:$0xf]
        %v853 = vld [vmem:[%s829 + $0x5c] sm:$0xf]
        %v854 = vld [vmem:[%s829 + $0x60] sm:$0xf]
        %v855 = vld [vmem:[%s829 + $0x64] sm:$0xf]
        %v856 = vld [vmem:[%s829 + $0x68] sm:$0xf]
        %v857 = vld [vmem:[%s829 + $0x6c] sm:$0xf]
        %v858 = vld [vmem:[%s829 + $0x70] sm:$0xf]
        %v859 = vld [vmem:[%s829 + $0x74] sm:$0xf]
        %v860 = vld [vmem:[%s829 + $0x78] sm:$0xf]
        %v861 = vld [vmem:[%s829 + $0x7c] sm:$0xf]
        %v862 = vld [vmem:[%s829 + $0x80] sm:$0xf]
        %v863 = vld [vmem:[%s829 + $0x84] sm:$0xf]
        %v864 = vld [vmem:[%s829 + $0x88] sm:$0xf]
        %v865 = vld [vmem:[%s829 + $0x8c] sm:$0xf]
        %v866 = vld [vmem:[%s829 + $0x90] sm:$0xf]
        %v867 = vld [vmem:[%s829 + $0x94] sm:$0xf]
        %v868 = vld [vmem:[%s829 + $0x98] sm:$0xf]
        %v869 = vld [vmem:[%s829 + $0x9c] sm:$0xf]
        %v870 = vld [vmem:[%s829 + $0xa0] sm:$0xf]
        %v871 = vld [vmem:[%s829 + $0xa4] sm:$0xf]
        %v872 = vld [vmem:[%s829 + $0xa8] sm:$0xf]
        %v873 = vld [vmem:[%s829 + $0xac] sm:$0xf]
        %v874 = vld [vmem:[%s829 + $0xb0] sm:$0xf]
        %v875 = vld [vmem:[%s829 + $0xb4] sm:$0xf]
        %v876 = vld [vmem:[%s829 + $0xb8] sm:$0xf]
        %v877 = vld [vmem:[%s829 + $0xbc] sm:$0xf]
        %v878 = vld [vmem:[%s829 + $0xc0] sm:$0xf]
        %v879 = vld [vmem:[%s829 + $0xc4] sm:$0xf]
        %v880 = vld [vmem:[%s829 + $0xc8] sm:$0xf]
        %v881 = vld [vmem:[%s829 + $0xcc] sm:$0xf]
        %v882 = vld [vmem:[%s829 + $0xd0] sm:$0xf]
        %v883 = vld [vmem:[%s829 + $0xd4] sm:$0xf]
        %v884 = vld [vmem:[%s829 + $0xd8] sm:$0xf]
        %v885 = vld [vmem:[%s829 + $0xdc] sm:$0xf]
        %v886 = vld [vmem:[%s829 + $0xe0] sm:$0xf]
        %v887 = vld [vmem:[%s829 + $0xe4] sm:$0xf]
        %v888 = vld [vmem:[%s829 + $0xe8] sm:$0xf]
        %v889 = vld [vmem:[%s829 + $0xec] sm:$0xf]
        %v890 = vld [vmem:[%s829 + $0xf0] sm:$0xf]
        %v891 = vld [vmem:[%s829 + $0xf4] sm:$0xf]
        %v892 = vld [vmem:[%s829 + $0xf8] sm:$0xf]
        %v893 = vld [vmem:[%s829 + $0xfc] sm:$0xf]
        %v894 = vld [vmem:[%s829 + $0x100] sm:$0xf]
        %v895 = vld [vmem:[%s829 + $0x104] sm:$0xf]
        %v896 = vld [vmem:[%s829 + $0x108] sm:$0xf]
        %v897 = vld [vmem:[%s829 + $0x10c] sm:$0xf]
        %v898 = vld [vmem:[%s829 + $0x110] sm:$0xf]
        %v899 = vld [vmem:[%s829 + $0x114] sm:$0xf]
        %v900 = vld [vmem:[%s829 + $0x118] sm:$0xf]
        %v901 = vld [vmem:[%s829 + $0x11c] sm:$0xf]
        %v902 = vld [vmem:[%s829 + $0x120] sm:$0xf]
        %v903 = vld [vmem:[%s829 + $0x124] sm:$0xf]
        %v904 = vld [vmem:[%s829 + $0x128] sm:$0xf]
        %v905 = vld [vmem:[%s829 + $0x12c] sm:$0xf]
        %v906 = vld [vmem:[%s829 + $0x130] sm:$0xf]
        %v907 = vld [vmem:[%s829 + $0x134] sm:$0xf]
        %v908 = vld [vmem:[%s829 + $0x138] sm:$0xf]
        %v909 = vld [vmem:[%s829 + $0x13c] sm:$0xf]
        %v990 = vunpack.c.l.b16 %v830
        %v991 = vunpack.c.l.b16 %v831
        %v992 = vunpack.c.l.b16 %v832
        %v993 = vunpack.c.l.b16 %v833
        %v994 = vunpack.c.l.b16 %v834
        %v995 = vunpack.c.l.b16 %v835
        %v996 = vunpack.c.l.b16 %v836
        %v997 = vunpack.c.l.b16 %v837
        %v998 = vunpack.c.l.b16 %v838
        %v999 = vunpack.c.l.b16 %v839
        %v1000 = vunpack.c.l.b16 %v840
        %v1001 = vunpack.c.l.b16 %v841
        %v1002 = vunpack.c.l.b16 %v842
        %v1003 = vunpack.c.l.b16 %v843
        %v1004 = vunpack.c.l.b16 %v844
        %v1005 = vunpack.c.l.b16 %v845
        %v1006 = vunpack.c.l.b16 %v846
        %v1007 = vunpack.c.l.b16 %v847
        %v1008 = vunpack.c.l.b16 %v848
        %v1009 = vunpack.c.l.b16 %v849
        %v1010 = vunpack.c.l.b16 %v850
        %v1011 = vunpack.c.l.b16 %v851
        %v1012 = vunpack.c.l.b16 %v852
        %v1013 = vunpack.c.l.b16 %v853
        %v1014 = vunpack.c.l.b16 %v854
        %v1015 = vunpack.c.l.b16 %v855
        %v1016 = vunpack.c.l.b16 %v856
        %v1017 = vunpack.c.l.b16 %v857
        %v1018 = vunpack.c.l.b16 %v858
        %v1019 = vunpack.c.l.b16 %v859
        %v1020 = vunpack.c.l.b16 %v860
        %v1021 = vunpack.c.l.b16 %v861
        %v1022 = vunpack.c.l.b16 %v862
        %v1023 = vunpack.c.l.b16 %v863
        %v1024 = vunpack.c.l.b16 %v864
        %v1025 = vunpack.c.l.b16 %v865
        %v1026 = vunpack.c.l.b16 %v866
        %v1027 = vunpack.c.l.b16 %v867
        %v1028 = vunpack.c.l.b16 %v868
        %v1029 = vunpack.c.l.b16 %v869
        %v1030 = vunpack.c.l.b16 %v870
        %v1031 = vunpack.c.l.b16 %v871
        %v1032 = vunpack.c.l.b16 %v872
        %v1033 = vunpack.c.l.b16 %v873
        %v1034 = vunpack.c.l.b16 %v874
        %v1035 = vunpack.c.l.b16 %v875
        %v1036 = vunpack.c.l.b16 %v876
        %v1037 = vunpack.c.l.b16 %v877
        %v1038 = vunpack.c.l.b16 %v878
        %v1039 = vunpack.c.l.b16 %v879
        %v1040 = vunpack.c.l.b16 %v880
        %v1041 = vunpack.c.l.b16 %v881
        %v1042 = vunpack.c.l.b16 %v882
        %v1043 = vunpack.c.l.b16 %v883
        %v1044 = vunpack.c.l.b16 %v884
        %v1045 = vunpack.c.l.b16 %v885
        %v1046 = vunpack.c.l.b16 %v886
        %v1047 = vunpack.c.l.b16 %v887
        %v1048 = vunpack.c.l.b16 %v888
        %v1049 = vunpack.c.l.b16 %v889
        %v1050 = vunpack.c.l.b16 %v890
        %v1051 = vunpack.c.l.b16 %v891
        %v1052 = vunpack.c.l.b16 %v892
        %v1053 = vunpack.c.l.b16 %v893
        %v1054 = vunpack.c.l.b16 %v894
        %v1055 = vunpack.c.l.b16 %v895
        %v1056 = vunpack.c.l.b16 %v896
        %v1057 = vunpack.c.l.b16 %v897
        %v1058 = vunpack.c.l.b16 %v898
        %v1059 = vunpack.c.l.b16 %v899
        %v1060 = vunpack.c.l.b16 %v900
        %v1061 = vunpack.c.l.b16 %v901
        %v1062 = vunpack.c.l.b16 %v902
        %v1063 = vunpack.c.l.b16 %v903
        %v1064 = vunpack.c.l.b16 %v904
        %v1065 = vunpack.c.l.b16 %v905
        %v1066 = vunpack.c.l.b16 %v906
        %v1067 = vunpack.c.l.b16 %v907
        %v1068 = vunpack.c.l.b16 %v908
        %v1069 = vunpack.c.l.b16 %v909
        %v1070 = vpack.c.b16 %v991, %v990
        %v1071 = vpack.c.b16 %v993, %v992
        %v1072 = vpack.c.b16 %v995, %v994
        %v1073 = vpack.c.b16 %v997, %v996
        %v1074 = vpack.c.b16 %v999, %v998
        %v1075 = vpack.c.b16 %v1001, %v1000
        %v1076 = vpack.c.b16 %v1003, %v1002
        %v1077 = vpack.c.b16 %v1005, %v1004
        %v1078 = vpack.c.b16 %v1007, %v1006
        %v1079 = vpack.c.b16 %v1009, %v1008
        %v1080 = vpack.c.b16 %v1011, %v1010
        %v1081 = vpack.c.b16 %v1013, %v1012
        %v1082 = vpack.c.b16 %v1015, %v1014
        %v1083 = vpack.c.b16 %v1017, %v1016
        %v1084 = vpack.c.b16 %v1019, %v1018
        %v1085 = vpack.c.b16 %v1021, %v1020
        %v1086 = vpack.c.b16 %v1023, %v1022
        %v1087 = vpack.c.b16 %v1025, %v1024
        %v1088 = vpack.c.b16 %v1027, %v1026
        %v1089 = vpack.c.b16 %v1029, %v1028
        %v1090 = vpack.c.b16 %v1031, %v1030
        %v1091 = vpack.c.b16 %v1033, %v1032
        %v1092 = vpack.c.b16 %v1035, %v1034
        %v1093 = vpack.c.b16 %v1037, %v1036
        %v1094 = vpack.c.b16 %v1039, %v1038
        %v1095 = vpack.c.b16 %v1041, %v1040
        %v1096 = vpack.c.b16 %v1043, %v1042
        %v1097 = vpack.c.b16 %v1045, %v1044
        %v1098 = vpack.c.b16 %v1047, %v1046
        %v1099 = vpack.c.b16 %v1049, %v1048
        %v1100 = vpack.c.b16 %v1051, %v1050
        %v1101 = vpack.c.b16 %v1053, %v1052
        %v1102 = vpack.c.b16 %v1055, %v1054
        %v1103 = vpack.c.b16 %v1057, %v1056
        %v1104 = vpack.c.b16 %v1059, %v1058
        %v1105 = vpack.c.b16 %v1061, %v1060
        %v1106 = vpack.c.b16 %v1063, %v1062
        %v1107 = vpack.c.b16 %v1065, %v1064
        %v1108 = vpack.c.b16 %v1067, %v1066
        %v1109 = vpack.c.b16 %v1069, %v1068
        %1150 = vmatprep.subr.bf16.mxu0 0
        %1151 = vmatpush1.bf16.msra.mxu0 %v1077
        %1152 = vmatprep.subr.bf16.mxu0 0
        %1153 = vmatpush1.bf16.msra.mxu0 %v1076
        %1154 = vmatprep.subr.bf16.mxu0 0
        %1155 = vmatpush1.bf16.msra.mxu0 %v1075
        %1156 = vmatprep.subr.bf16.mxu0 0
        %1157 = vmatpush1.bf16.msra.mxu0 %v1074
        %1158 = vmatprep.subr.bf16.mxu0 0
        %1159 = vmatpush1.bf16.msra.mxu0 %v1073
        %1160 = vmatprep.subr.bf16.mxu0 0
        %1161 = vmatpush1.bf16.msra.mxu0 %v1072
        %1162 = vmatprep.subr.bf16.mxu0 0
        %1163 = vmatpush1.bf16.msra.mxu0 %v1071
        %1164 = vmatprep.subr.bf16.mxu0 0
        %1165 = vmatpush1.bf16.msra.mxu0 %v1070
        %1166 = vmatprep.subr.bf16.mxu0 0
        %1167 = vmatpush2.bf16.msra.mxu0 %v1085
        %1168 = vmatprep.subr.bf16.mxu0 0
        %1169 = vmatpush2.bf16.msra.mxu0 %v1084
        %1170 = vmatprep.subr.bf16.mxu0 0
        %1171 = vmatpush2.bf16.msra.mxu0 %v1083
        %1172 = vmatprep.subr.bf16.mxu0 0
        %1173 = vmatpush2.bf16.msra.mxu0 %v1082
        %1174 = vmatprep.subr.bf16.mxu0 0
        %1175 = vmatpush2.bf16.msra.mxu0 %v1081
        %1176 = vmatprep.subr.bf16.mxu0 0
        %1177 = vmatpush2.bf16.msra.mxu0 %v1080
        %1178 = vmatprep.subr.bf16.mxu0 0
        %1179 = vmatpush2.bf16.msra.mxu0 %v1079
        %1180 = vmatprep.subr.bf16.mxu0 0
        %1181 = vmatpush2.bf16.msra.mxu0 %v1078
        %1182 = vmatprep.mubr.bf16.mxu0 %v792
        %1183 = vmatmul.mubr.bf16.gmra.mxu0 %v776
        %v1184 = vpop.f32.mrf.mxu0
        %v1185 = vadd.f32 0.0, %v1184
        %v1186 = vpop.f32.mrf.mxu0
        %v1187 = vpop.f32.mrf.mxu0
        %v1188 = vadd.f32 0.0, %v1187
        %v1189 = vpop.f32.mrf.mxu0
        %1190 = vdwg.mxu0
        %1191 = vmatprep.subr.bf16.mxu0 0
        %1192 = vmatpush1.bf16.msra.mxu0 %v1093
        %1193 = vmatprep.subr.bf16.mxu0 0
        %1194 = vmatpush1.bf16.msra.mxu0 %v1092
        %1195 = vmatprep.subr.bf16.mxu0 0
        %1196 = vmatpush1.bf16.msra.mxu0 %v1091
        %1197 = vmatprep.subr.bf16.mxu0 0
        %1198 = vmatpush1.bf16.msra.mxu0 %v1090
        %1199 = vmatprep.subr.bf16.mxu0 0
        %1200 = vmatpush1.bf16.msra.mxu0 %v1089
        %1201 = vmatprep.subr.bf16.mxu0 0
        %1202 = vmatpush1.bf16.msra.mxu0 %v1088
        %1203 = vmatprep.subr.bf16.mxu0 0
        %1204 = vmatpush1.bf16.msra.mxu0 %v1087
        %1205 = vmatprep.subr.bf16.mxu0 0
        %1206 = vmatpush1.bf16.msra.mxu0 %v1086
        %1207 = vmatprep.subr.bf16.mxu0 0
        %1208 = vmatpush2.bf16.msra.mxu0 %v1101
        %1209 = vmatprep.subr.bf16.mxu0 0
        %1210 = vmatpush2.bf16.msra.mxu0 %v1100
        %1211 = vmatprep.subr.bf16.mxu0 0
        %1212 = vmatpush2.bf16.msra.mxu0 %v1099
        %1213 = vmatprep.subr.bf16.mxu0 0
        %1214 = vmatpush2.bf16.msra.mxu0 %v1098
        %1215 = vmatprep.subr.bf16.mxu0 0
        %1216 = vmatpush2.bf16.msra.mxu0 %v1097
        %1217 = vmatprep.subr.bf16.mxu0 0
        %1218 = vmatpush2.bf16.msra.mxu0 %v1096
        %1219 = vmatprep.subr.bf16.mxu0 0
        %1220 = vmatpush2.bf16.msra.mxu0 %v1095
        %1221 = vmatprep.subr.bf16.mxu0 0
        %1222 = vmatpush2.bf16.msra.mxu0 %v1094
        %1223 = vmatprep.mubr.bf16.mxu0 %v820
        %1224 = vmatmul.mubr.bf16.gmra.mxu0 %v799
        %v1225 = vpop.f32.mrf.mxu0
        %v1226 = vadd.f32 %v1185, %v1225
        %v1227 = vpop.f32.mrf.mxu0
        %v1228 = vpop.f32.mrf.mxu0
        %v1229 = vadd.f32 %v1188, %v1228
        %v1230 = vpop.f32.mrf.mxu0
        %1231 = vdwg.mxu0
        %1232 = vmatprep.subr.bf16.mxu0 0
        %1233 = vmatpush1.bf16.msra.mxu0 %v1109
        %1234 = vmatprep.subr.bf16.mxu0 0
        %1235 = vmatpush1.bf16.msra.mxu0 %v1108
        %1236 = vmatprep.subr.bf16.mxu0 0
        %1237 = vmatpush1.bf16.msra.mxu0 %v1107
        %1238 = vmatprep.subr.bf16.mxu0 0
        %1239 = vmatpush1.bf16.msra.mxu0 %v1106
        %1240 = vmatprep.subr.bf16.mxu0 0
        %1241 = vmatpush1.bf16.msra.mxu0 %v1105
        %1242 = vmatprep.subr.bf16.mxu0 0
        %1243 = vmatpush1.bf16.msra.mxu0 %v1104
        %1244 = vmatprep.subr.bf16.mxu0 0
        %1245 = vmatpush1.bf16.msra.mxu0 %v1103
        %1246 = vmatprep.subr.bf16.mxu0 0
        %1247 = vmatpush1.bf16.msra.mxu0 %v1102
        %1248 = vmatprep.subr.bf16.mxu0 0
        %1249 = vmatpush2.bf16.msra.mxu0 0
        %1250 = vmatprep.subr.bf16.mxu0 0
        %1251 = vmatpush2.bf16.msra.mxu0 0
        %1252 = vmatprep.subr.bf16.mxu0 0
        %1253 = vmatpush2.bf16.msra.mxu0 0
        %1254 = vmatprep.subr.bf16.mxu0 0
        %1255 = vmatpush2.bf16.msra.mxu0 0
        %1256 = vmatprep.subr.bf16.mxu0 0
        %1257 = vmatpush2.bf16.msra.mxu0 0
        %1258 = vmatprep.subr.bf16.mxu0 0
        %1259 = vmatpush2.bf16.msra.mxu0 0
        %1260 = vmatprep.subr.bf16.mxu0 0
        %1261 = vmatpush2.bf16.msra.mxu0 0
        %1262 = vmatprep.subr.bf16.mxu0 0
        %1263 = vmatpush2.bf16.msra.mxu0 0
        %1264 = vmatprep.mubr.bf16.mxu0 0
        %1265 = vmatmul.mubr.bf16.gmra.mxu0 %v827
        %v1266 = vpop.f32.mrf.mxu0
        %v1267 = vadd.f32 %v1226, %v1266
        %v1268 = vpop.f32.mrf.mxu0
        %v1269 = vpop.f32.mrf.mxu0
        %v1270 = vadd.f32 %v1229, %v1269
        %v1271 = vpop.f32.mrf.mxu0
        %1272 = vdwg.mxu0
        %s1273 = scalar_lea.vmem %s2, 1
        %v1274 = vld [vmem:[%s1273] sm:$0x1]
        %v1276 = vlaneseq
        %v1277 = vshrl.u32 %v1276, 7
        %v1278 = vsub.s32 0, %v1277
        %v1279 = vrot.slane %v1274, %v1278
        %v1281 = vmul.f32 %v1267, %v1279
        %v1282 = vmul.f32 %v1270, %v1279
        %s1283 = scalar_lea.vmem %s3, 1
        %v1284 = vld [vmem:[%s1283] sm:$0x1]
        %v1286 = vlaneseq
        %v1287 = vshrl.u32 %v1286, 7
        %v1288 = vsub.s32 0, %v1287
        %v1289 = vrot.slane %v1284, %v1288
        %v1291 = vadd.f32 %v1281, %v1289
        %v1292 = vadd.f32 %v1282, %v1289
        %v1293 = vtanh.pop %v1291
        %v1294 = vtanh.pop %v1292
        %v1295 = vpack.c.bf16 %v1294, %v1293
        %v1297 = vunpack.c.l.b16 %v1295
        %v1298 = vunpack.c.h.b16 %v1295
        %v1299 = vpack.c.b16 %v1297, %v1297
        %v1300 = vpack.c.b16 %v1298, %v1298
        %v1301 = vrot.slane %v1299, 7
        %v1302 = vrot.slane %v1301, 4
        %v1303 = vrot.slane %v1300, 7
        %v1304 = vsel %vm754, %v1302, %v1303
        %v1305 = vrot.slane %v1303, 4
        %1309 = vst [vmem:[#allocation3] sm:$0xe] %v1301
        %1310 = vst [vmem:[#allocation3 + $0x4] sm:$0xf] %v1304
        %1311 = vst [vmem:[#allocation3 + $0x8] sm:$0x1] %v1305
        %v1312 = vld [vmem:[#allocation3] sm:$0xf]
        %v1313 = vld [vmem:[#allocation3 + $0x4] sm:$0xf]
        %v1314 = vld [vmem:[#allocation3 + $0x8] sm:$0x1]
        %v1315 = vld [vmem:[#allocation3] sm:$0xe]
        %v1316 = vld [vmem:[#allocation3 + $0x8] sm:$0x3]
        %v1317 = vld [vmem:[#allocation3] sm:$0xc]
        %v1320 = vunpack.c.l.b16 %v1312
        %v1321 = vunpack.c.l.b16 %v1313
        %v1322 = vpack.c.b16 %v1321, %v1320
        %v1325 = vunpack.c.l.b16 %v1314
        %v1326 = vpack.c.b16 %v1325, %v1325
        %v1328 = vshrl.u32 %v1322, 16
        %v1330 = vshll.u32 %v1322, 16
        %v1332 = vrot.slane %v1330, 1
        %v1333 = vor.u32 %v1328, %v1332
        %v1335 = vshll.u32 %v1326, 16
        %v1337 = vrot.slane %v1335, 1
        %v1338 = vsel %vm231, %v1333, %v1337
        %v1341 = vunpack.c.l.b16 %v1315
        %v1342 = vpack.c.b16 %v1321, %v1341
        %v1343 = vrot.slane %v1342, 1
        %v1344 = vrot.slane %v1326, 1
        %v1345 = vsel %vm248, %v1343, %v1344
        %v1348 = vunpack.c.l.b16 %v1316
        %v1349 = vpack.c.b16 %v1348, %v1348
        %v1351 = vshrl.u32 %v1342, 16
        %v1353 = vrot.slane %v1351, 1
        %v1354 = vshll.u32 %v1342, 16
        %v1356 = vrot.slane %v1354, 2
        %v1357 = vor.u32 %v1353, %v1356
        %v1359 = vshrl.u32 %v1349, 16
        %v1361 = vrot.slane %v1359, 1
        %v1362 = vshll.u32 %v1349, 16
        %v1364 = vrot.slane %v1362, 2
        %v1365 = vor.u32 %v1361, %v1364
        %v1366 = vsel %vm256, %v1357, %v1365
        %v1369 = vunpack.c.l.b16 %v1317
        %v1370 = vpack.c.b16 %v1321, %v1369
        %v1371 = vrot.slane %v1370, 2
        %v1372 = vrot.slane %v1349, 2
        %v1373 = vsel %vm278, %v1371, %v1372
        %s1375 = scalar_lea.vmem [#allocation4], 640
        %v1376 = vld [vmem:[%s1375] sm:$0xf]
        %v1377 = vld [vmem:[%s1375 + $0x4] sm:$0xf]
        %v1378 = vld [vmem:[%s1375 + $0x8] sm:$0xf]
        %v1379 = vld [vmem:[%s1375 + $0xc] sm:$0xf]
        %v1380 = vld [vmem:[%s1375 + $0x10] sm:$0xf]
        %v1381 = vld [vmem:[%s1375 + $0x14] sm:$0xf]
        %v1382 = vld [vmem:[%s1375 + $0x18] sm:$0xf]
        %v1383 = vld [vmem:[%s1375 + $0x1c] sm:$0xf]
        %v1384 = vld [vmem:[%s1375 + $0x20] sm:$0xf]
        %v1385 = vld [vmem:[%s1375 + $0x24] sm:$0xf]
        %v1386 = vld [vmem:[%s1375 + $0x28] sm:$0xf]
        %v1387 = vld [vmem:[%s1375 + $0x2c] sm:$0xf]
        %v1388 = vld [vmem:[%s1375 + $0x30] sm:$0xf]
        %v1389 = vld [vmem:[%s1375 + $0x34] sm:$0xf]
        %v1390 = vld [vmem:[%s1375 + $0x38] sm:$0xf]
        %v1391 = vld [vmem:[%s1375 + $0x3c] sm:$0xf]
        %v1392 = vld [vmem:[%s1375 + $0x40] sm:$0xf]
        %v1393 = vld [vmem:[%s1375 + $0x44] sm:$0xf]
        %v1394 = vld [vmem:[%s1375 + $0x48] sm:$0xf]
        %v1395 = vld [vmem:[%s1375 + $0x4c] sm:$0xf]
        %v1396 = vld [vmem:[%s1375 + $0x50] sm:$0xf]
        %v1397 = vld [vmem:[%s1375 + $0x54] sm:$0xf]
        %v1398 = vld [vmem:[%s1375 + $0x58] sm:$0xf]
        %v1399 = vld [vmem:[%s1375 + $0x5c] sm:$0xf]
        %v1400 = vld [vmem:[%s1375 + $0x60] sm:$0xf]
        %v1401 = vld [vmem:[%s1375 + $0x64] sm:$0xf]
        %v1402 = vld [vmem:[%s1375 + $0x68] sm:$0xf]
        %v1403 = vld [vmem:[%s1375 + $0x6c] sm:$0xf]
        %v1404 = vld [vmem:[%s1375 + $0x70] sm:$0xf]
        %v1405 = vld [vmem:[%s1375 + $0x74] sm:$0xf]
        %v1406 = vld [vmem:[%s1375 + $0x78] sm:$0xf]
        %v1407 = vld [vmem:[%s1375 + $0x7c] sm:$0xf]
        %v1408 = vld [vmem:[%s1375 + $0x80] sm:$0xf]
        %v1409 = vld [vmem:[%s1375 + $0x84] sm:$0xf]
        %v1410 = vld [vmem:[%s1375 + $0x88] sm:$0xf]
        %v1411 = vld [vmem:[%s1375 + $0x8c] sm:$0xf]
        %v1412 = vld [vmem:[%s1375 + $0x90] sm:$0xf]
        %v1413 = vld [vmem:[%s1375 + $0x94] sm:$0xf]
        %v1414 = vld [vmem:[%s1375 + $0x98] sm:$0xf]
        %v1415 = vld [vmem:[%s1375 + $0x9c] sm:$0xf]
        %v1416 = vld [vmem:[%s1375 + $0xa0] sm:$0xf]
        %v1417 = vld [vmem:[%s1375 + $0xa4] sm:$0xf]
        %v1418 = vld [vmem:[%s1375 + $0xa8] sm:$0xf]
        %v1419 = vld [vmem:[%s1375 + $0xac] sm:$0xf]
        %v1420 = vld [vmem:[%s1375 + $0xb0] sm:$0xf]
        %v1421 = vld [vmem:[%s1375 + $0xb4] sm:$0xf]
        %v1422 = vld [vmem:[%s1375 + $0xb8] sm:$0xf]
        %v1423 = vld [vmem:[%s1375 + $0xbc] sm:$0xf]
        %v1424 = vld [vmem:[%s1375 + $0xc0] sm:$0xf]
        %v1425 = vld [vmem:[%s1375 + $0xc4] sm:$0xf]
        %v1426 = vld [vmem:[%s1375 + $0xc8] sm:$0xf]
        %v1427 = vld [vmem:[%s1375 + $0xcc] sm:$0xf]
        %v1428 = vld [vmem:[%s1375 + $0xd0] sm:$0xf]
        %v1429 = vld [vmem:[%s1375 + $0xd4] sm:$0xf]
        %v1430 = vld [vmem:[%s1375 + $0xd8] sm:$0xf]
        %v1431 = vld [vmem:[%s1375 + $0xdc] sm:$0xf]
        %v1432 = vld [vmem:[%s1375 + $0xe0] sm:$0xf]
        %v1433 = vld [vmem:[%s1375 + $0xe4] sm:$0xf]
        %v1434 = vld [vmem:[%s1375 + $0xe8] sm:$0xf]
        %v1435 = vld [vmem:[%s1375 + $0xec] sm:$0xf]
        %v1436 = vld [vmem:[%s1375 + $0xf0] sm:$0xf]
        %v1437 = vld [vmem:[%s1375 + $0xf4] sm:$0xf]
        %v1438 = vld [vmem:[%s1375 + $0xf8] sm:$0xf]
        %v1439 = vld [vmem:[%s1375 + $0xfc] sm:$0xf]
        %v1440 = vld [vmem:[%s1375 + $0x100] sm:$0xf]
        %v1441 = vld [vmem:[%s1375 + $0x104] sm:$0xf]
        %v1442 = vld [vmem:[%s1375 + $0x108] sm:$0xf]
        %v1443 = vld [vmem:[%s1375 + $0x10c] sm:$0xf]
        %v1444 = vld [vmem:[%s1375 + $0x110] sm:$0xf]
        %v1445 = vld [vmem:[%s1375 + $0x114] sm:$0xf]
        %v1446 = vld [vmem:[%s1375 + $0x118] sm:$0xf]
        %v1447 = vld [vmem:[%s1375 + $0x11c] sm:$0xf]
        %v1448 = vld [vmem:[%s1375 + $0x120] sm:$0xf]
        %v1449 = vld [vmem:[%s1375 + $0x124] sm:$0xf]
        %v1450 = vld [vmem:[%s1375 + $0x128] sm:$0xf]
        %v1451 = vld [vmem:[%s1375 + $0x12c] sm:$0xf]
        %v1452 = vld [vmem:[%s1375 + $0x130] sm:$0xf]
        %v1453 = vld [vmem:[%s1375 + $0x134] sm:$0xf]
        %v1454 = vld [vmem:[%s1375 + $0x138] sm:$0xf]
        %v1455 = vld [vmem:[%s1375 + $0x13c] sm:$0xf]
        %v1536 = vunpack.c.l.b16 %v1376
        %v1537 = vunpack.c.l.b16 %v1377
        %v1538 = vunpack.c.l.b16 %v1378
        %v1539 = vunpack.c.l.b16 %v1379
        %v1540 = vunpack.c.l.b16 %v1380
        %v1541 = vunpack.c.l.b16 %v1381
        %v1542 = vunpack.c.l.b16 %v1382
        %v1543 = vunpack.c.l.b16 %v1383
        %v1544 = vunpack.c.l.b16 %v1384
        %v1545 = vunpack.c.l.b16 %v1385
        %v1546 = vunpack.c.l.b16 %v1386
        %v1547 = vunpack.c.l.b16 %v1387
        %v1548 = vunpack.c.l.b16 %v1388
        %v1549 = vunpack.c.l.b16 %v1389
        %v1550 = vunpack.c.l.b16 %v1390
        %v1551 = vunpack.c.l.b16 %v1391
        %v1552 = vunpack.c.l.b16 %v1392
        %v1553 = vunpack.c.l.b16 %v1393
        %v1554 = vunpack.c.l.b16 %v1394
        %v1555 = vunpack.c.l.b16 %v1395
        %v1556 = vunpack.c.l.b16 %v1396
        %v1557 = vunpack.c.l.b16 %v1397
        %v1558 = vunpack.c.l.b16 %v1398
        %v1559 = vunpack.c.l.b16 %v1399
        %v1560 = vunpack.c.l.b16 %v1400
        %v1561 = vunpack.c.l.b16 %v1401
        %v1562 = vunpack.c.l.b16 %v1402
        %v1563 = vunpack.c.l.b16 %v1403
        %v1564 = vunpack.c.l.b16 %v1404
        %v1565 = vunpack.c.l.b16 %v1405
        %v1566 = vunpack.c.l.b16 %v1406
        %v1567 = vunpack.c.l.b16 %v1407
        %v1568 = vunpack.c.l.b16 %v1408
        %v1569 = vunpack.c.l.b16 %v1409
        %v1570 = vunpack.c.l.b16 %v1410
        %v1571 = vunpack.c.l.b16 %v1411
        %v1572 = vunpack.c.l.b16 %v1412
        %v1573 = vunpack.c.l.b16 %v1413
        %v1574 = vunpack.c.l.b16 %v1414
        %v1575 = vunpack.c.l.b16 %v1415
        %v1576 = vunpack.c.l.b16 %v1416
        %v1577 = vunpack.c.l.b16 %v1417
        %v1578 = vunpack.c.l.b16 %v1418
        %v1579 = vunpack.c.l.b16 %v1419
        %v1580 = vunpack.c.l.b16 %v1420
        %v1581 = vunpack.c.l.b16 %v1421
        %v1582 = vunpack.c.l.b16 %v1422
        %v1583 = vunpack.c.l.b16 %v1423
        %v1584 = vunpack.c.l.b16 %v1424
        %v1585 = vunpack.c.l.b16 %v1425
        %v1586 = vunpack.c.l.b16 %v1426
        %v1587 = vunpack.c.l.b16 %v1427
        %v1588 = vunpack.c.l.b16 %v1428
        %v1589 = vunpack.c.l.b16 %v1429
        %v1590 = vunpack.c.l.b16 %v1430
        %v1591 = vunpack.c.l.b16 %v1431
        %v1592 = vunpack.c.l.b16 %v1432
        %v1593 = vunpack.c.l.b16 %v1433
        %v1594 = vunpack.c.l.b16 %v1434
        %v1595 = vunpack.c.l.b16 %v1435
        %v1596 = vunpack.c.l.b16 %v1436
        %v1597 = vunpack.c.l.b16 %v1437
        %v1598 = vunpack.c.l.b16 %v1438
        %v1599 = vunpack.c.l.b16 %v1439
        %v1600 = vunpack.c.l.b16 %v1440
        %v1601 = vunpack.c.l.b16 %v1441
        %v1602 = vunpack.c.l.b16 %v1442
        %v1603 = vunpack.c.l.b16 %v1443
        %v1604 = vunpack.c.l.b16 %v1444
        %v1605 = vunpack.c.l.b16 %v1445
        %v1606 = vunpack.c.l.b16 %v1446
        %v1607 = vunpack.c.l.b16 %v1447
        %v1608 = vunpack.c.l.b16 %v1448
        %v1609 = vunpack.c.l.b16 %v1449
        %v1610 = vunpack.c.l.b16 %v1450
        %v1611 = vunpack.c.l.b16 %v1451
        %v1612 = vunpack.c.l.b16 %v1452
        %v1613 = vunpack.c.l.b16 %v1453
        %v1614 = vunpack.c.l.b16 %v1454
        %v1615 = vunpack.c.l.b16 %v1455
        %v1616 = vpack.c.b16 %v1537, %v1536
        %v1617 = vpack.c.b16 %v1539, %v1538
        %v1618 = vpack.c.b16 %v1541, %v1540
        %v1619 = vpack.c.b16 %v1543, %v1542
        %v1620 = vpack.c.b16 %v1545, %v1544
        %v1621 = vpack.c.b16 %v1547, %v1546
        %v1622 = vpack.c.b16 %v1549, %v1548
        %v1623 = vpack.c.b16 %v1551, %v1550
        %v1624 = vpack.c.b16 %v1553, %v1552
        %v1625 = vpack.c.b16 %v1555, %v1554
        %v1626 = vpack.c.b16 %v1557, %v1556
        %v1627 = vpack.c.b16 %v1559, %v1558
        %v1628 = vpack.c.b16 %v1561, %v1560
        %v1629 = vpack.c.b16 %v1563, %v1562
        %v1630 = vpack.c.b16 %v1565, %v1564
        %v1631 = vpack.c.b16 %v1567, %v1566
        %v1632 = vpack.c.b16 %v1569, %v1568
        %v1633 = vpack.c.b16 %v1571, %v1570
        %v1634 = vpack.c.b16 %v1573, %v1572
        %v1635 = vpack.c.b16 %v1575, %v1574
        %v1636 = vpack.c.b16 %v1577, %v1576
        %v1637 = vpack.c.b16 %v1579, %v1578
        %v1638 = vpack.c.b16 %v1581, %v1580
        %v1639 = vpack.c.b16 %v1583, %v1582
        %v1640 = vpack.c.b16 %v1585, %v1584
        %v1641 = vpack.c.b16 %v1587, %v1586
        %v1642 = vpack.c.b16 %v1589, %v1588
        %v1643 = vpack.c.b16 %v1591, %v1590
        %v1644 = vpack.c.b16 %v1593, %v1592
        %v1645 = vpack.c.b16 %v1595, %v1594
        %v1646 = vpack.c.b16 %v1597, %v1596
        %v1647 = vpack.c.b16 %v1599, %v1598
        %v1648 = vpack.c.b16 %v1601, %v1600
        %v1649 = vpack.c.b16 %v1603, %v1602
        %v1650 = vpack.c.b16 %v1605, %v1604
        %v1651 = vpack.c.b16 %v1607, %v1606
        %v1652 = vpack.c.b16 %v1609, %v1608
        %v1653 = vpack.c.b16 %v1611, %v1610
        %v1654 = vpack.c.b16 %v1613, %v1612
        %v1655 = vpack.c.b16 %v1615, %v1614
        %1696 = vmatprep.subr.bf16.mxu0 0
        %1697 = vmatpush1.bf16.msra.mxu0 %v1623
        %1698 = vmatprep.subr.bf16.mxu0 0
        %1699 = vmatpush1.bf16.msra.mxu0 %v1622
        %1700 = vmatprep.subr.bf16.mxu0 0
        %1701 = vmatpush1.bf16.msra.mxu0 %v1621
        %1702 = vmatprep.subr.bf16.mxu0 0
        %1703 = vmatpush1.bf16.msra.mxu0 %v1620
        %1704 = vmatprep.subr.bf16.mxu0 0
        %1705 = vmatpush1.bf16.msra.mxu0 %v1619
        %1706 = vmatprep.subr.bf16.mxu0 0
        %1707 = vmatpush1.bf16.msra.mxu0 %v1618
        %1708 = vmatprep.subr.bf16.mxu0 0
        %1709 = vmatpush1.bf16.msra.mxu0 %v1617
        %1710 = vmatprep.subr.bf16.mxu0 0
        %1711 = vmatpush1.bf16.msra.mxu0 %v1616
        %1712 = vmatprep.subr.bf16.mxu0 0
        %1713 = vmatpush2.bf16.msra.mxu0 %v1631
        %1714 = vmatprep.subr.bf16.mxu0 0
        %1715 = vmatpush2.bf16.msra.mxu0 %v1630
        %1716 = vmatprep.subr.bf16.mxu0 0
        %1717 = vmatpush2.bf16.msra.mxu0 %v1629
        %1718 = vmatprep.subr.bf16.mxu0 0
        %1719 = vmatpush2.bf16.msra.mxu0 %v1628
        %1720 = vmatprep.subr.bf16.mxu0 0
        %1721 = vmatpush2.bf16.msra.mxu0 %v1627
        %1722 = vmatprep.subr.bf16.mxu0 0
        %1723 = vmatpush2.bf16.msra.mxu0 %v1626
        %1724 = vmatprep.subr.bf16.mxu0 0
        %1725 = vmatpush2.bf16.msra.mxu0 %v1625
        %1726 = vmatprep.subr.bf16.mxu0 0
        %1727 = vmatpush2.bf16.msra.mxu0 %v1624
        %1728 = vmatprep.mubr.bf16.mxu0 %v1338
        %1729 = vmatmul.mubr.bf16.gmra.mxu0 %v1322
        %v1730 = vpop.f32.mrf.mxu0
        %v1731 = vadd.f32 0.0, %v1730
        %v1732 = vpop.f32.mrf.mxu0
        %v1733 = vpop.f32.mrf.mxu0
        %v1734 = vadd.f32 0.0, %v1733
        %v1735 = vpop.f32.mrf.mxu0
        %1736 = vdwg.mxu0
        %1737 = vmatprep.subr.bf16.mxu0 0
        %1738 = vmatpush1.bf16.msra.mxu0 %v1639
        %1739 = vmatprep.subr.bf16.mxu0 0
        %1740 = vmatpush1.bf16.msra.mxu0 %v1638
        %1741 = vmatprep.subr.bf16.mxu0 0
        %1742 = vmatpush1.bf16.msra.mxu0 %v1637
        %1743 = vmatprep.subr.bf16.mxu0 0
        %1744 = vmatpush1.bf16.msra.mxu0 %v1636
        %1745 = vmatprep.subr.bf16.mxu0 0
        %1746 = vmatpush1.bf16.msra.mxu0 %v1635
        %1747 = vmatprep.subr.bf16.mxu0 0
        %1748 = vmatpush1.bf16.msra.mxu0 %v1634
        %1749 = vmatprep.subr.bf16.mxu0 0
        %1750 = vmatpush1.bf16.msra.mxu0 %v1633
        %1751 = vmatprep.subr.bf16.mxu0 0
        %1752 = vmatpush1.bf16.msra.mxu0 %v1632
        %1753 = vmatprep.subr.bf16.mxu0 0
        %1754 = vmatpush2.bf16.msra.mxu0 %v1647
        %1755 = vmatprep.subr.bf16.mxu0 0
        %1756 = vmatpush2.bf16.msra.mxu0 %v1646
        %1757 = vmatprep.subr.bf16.mxu0 0
        %1758 = vmatpush2.bf16.msra.mxu0 %v1645
        %1759 = vmatprep.subr.bf16.mxu0 0
        %1760 = vmatpush2.bf16.msra.mxu0 %v1644
        %1761 = vmatprep.subr.bf16.mxu0 0
        %1762 = vmatpush2.bf16.msra.mxu0 %v1643
        %1763 = vmatprep.subr.bf16.mxu0 0
        %1764 = vmatpush2.bf16.msra.mxu0 %v1642
        %1765 = vmatprep.subr.bf16.mxu0 0
        %1766 = vmatpush2.bf16.msra.mxu0 %v1641
        %1767 = vmatprep.subr.bf16.mxu0 0
        %1768 = vmatpush2.bf16.msra.mxu0 %v1640
        %1769 = vmatprep.mubr.bf16.mxu0 %v1366
        %1770 = vmatmul.mubr.bf16.gmra.mxu0 %v1345
        %v1771 = vpop.f32.mrf.mxu0
        %v1772 = vadd.f32 %v1731, %v1771
        %v1773 = vpop.f32.mrf.mxu0
        %v1774 = vpop.f32.mrf.mxu0
        %v1775 = vadd.f32 %v1734, %v1774
        %v1776 = vpop.f32.mrf.mxu0
        %1777 = vdwg.mxu0
        %1778 = vmatprep.subr.bf16.mxu0 0
        %1779 = vmatpush1.bf16.msra.mxu0 %v1655
        %1780 = vmatprep.subr.bf16.mxu0 0
        %1781 = vmatpush1.bf16.msra.mxu0 %v1654
        %1782 = vmatprep.subr.bf16.mxu0 0
        %1783 = vmatpush1.bf16.msra.mxu0 %v1653
        %1784 = vmatprep.subr.bf16.mxu0 0
        %1785 = vmatpush1.bf16.msra.mxu0 %v1652
        %1786 = vmatprep.subr.bf16.mxu0 0
        %1787 = vmatpush1.bf16.msra.mxu0 %v1651
        %1788 = vmatprep.subr.bf16.mxu0 0
        %1789 = vmatpush1.bf16.msra.mxu0 %v1650
        %1790 = vmatprep.subr.bf16.mxu0 0
        %1791 = vmatpush1.bf16.msra.mxu0 %v1649
        %1792 = vmatprep.subr.bf16.mxu0 0
        %1793 = vmatpush1.bf16.msra.mxu0 %v1648
        %1794 = vmatprep.subr.bf16.mxu0 0
        %1795 = vmatpush2.bf16.msra.mxu0 0
        %1796 = vmatprep.subr.bf16.mxu0 0
        %1797 = vmatpush2.bf16.msra.mxu0 0
        %1798 = vmatprep.subr.bf16.mxu0 0
        %1799 = vmatpush2.bf16.msra.mxu0 0
        %1800 = vmatprep.subr.bf16.mxu0 0
        %1801 = vmatpush2.bf16.msra.mxu0 0
        %1802 = vmatprep.subr.bf16.mxu0 0
        %1803 = vmatpush2.bf16.msra.mxu0 0
        %1804 = vmatprep.subr.bf16.mxu0 0
        %1805 = vmatpush2.bf16.msra.mxu0 0
        %1806 = vmatprep.subr.bf16.mxu0 0
        %1807 = vmatpush2.bf16.msra.mxu0 0
        %1808 = vmatprep.subr.bf16.mxu0 0
        %1809 = vmatpush2.bf16.msra.mxu0 0
        %1810 = vmatprep.mubr.bf16.mxu0 0
        %1811 = vmatmul.mubr.bf16.gmra.mxu0 %v1373
        %v1812 = vpop.f32.mrf.mxu0
        %v1813 = vadd.f32 %v1772, %v1812
        %v1814 = vpop.f32.mrf.mxu0
        %v1815 = vpop.f32.mrf.mxu0
        %v1816 = vadd.f32 %v1775, %v1815
        %v1817 = vpop.f32.mrf.mxu0
        %1818 = vdwg.mxu0
        %s1819 = scalar_lea.vmem %s2, 2
        %v1820 = vld [vmem:[%s1819] sm:$0x1]
        %v1822 = vlaneseq
        %v1823 = vshrl.u32 %v1822, 7
        %v1824 = vsub.s32 0, %v1823
        %v1825 = vrot.slane %v1820, %v1824
        %v1827 = vmul.f32 %v1813, %v1825
        %v1828 = vmul.f32 %v1816, %v1825
        %s1829 = scalar_lea.vmem %s3, 2
        %v1830 = vld [vmem:[%s1829] sm:$0x1]
        %v1832 = vlaneseq
        %v1833 = vshrl.u32 %v1832, 7
        %v1834 = vsub.s32 0, %v1833
        %v1835 = vrot.slane %v1830, %v1834
        %v1837 = vadd.f32 %v1827, %v1835
        %v1838 = vadd.f32 %v1828, %v1835
        %v1839 = vtanh.pop %v1837
        %v1840 = vtanh.pop %v1838
        %v1841 = vpack.c.bf16 %v1840, %v1839
        %v1843 = vunpack.c.l.b16 %v1841
        %v1844 = vunpack.c.h.b16 %v1841
        %v1845 = vpack.c.b16 %v1843, %v1843
        %v1846 = vpack.c.b16 %v1844, %v1844
        %v1847 = vrot.slane %v1845, 7
        %v1848 = vrot.slane %v1847, 4
        %v1849 = vrot.slane %v1846, 7
        %v1850 = vsel %vm754, %v1848, %v1849
        %v1851 = vrot.slane %v1849, 4
        %1855 = vst [vmem:[#allocation2] sm:$0xe] %v1847
        %1856 = vst [vmem:[#allocation2 + $0x4] sm:$0xf] %v1850
        %1857 = vst [vmem:[#allocation2 + $0x8] sm:$0x1] %v1851
        %v1858 = vld [vmem:[#allocation2] sm:$0xf]
        %v1859 = vld [vmem:[#allocation2 + $0x4] sm:$0xf]
        %v1860 = vld [vmem:[#allocation2 + $0x8] sm:$0x1]
        %v1861 = vld [vmem:[#allocation2] sm:$0xe]
        %v1862 = vld [vmem:[#allocation2 + $0x8] sm:$0x3]
        %v1863 = vld [vmem:[#allocation2] sm:$0xc]
        %v1866 = vunpack.c.l.b16 %v1858
        %v1867 = vunpack.c.l.b16 %v1859
        %v1868 = vpack.c.b16 %v1867, %v1866
        %v1871 = vunpack.c.l.b16 %v1860
        %v1872 = vpack.c.b16 %v1871, %v1871
        %v1874 = vshrl.u32 %v1868, 16
        %v1876 = vshll.u32 %v1868, 16
        %v1878 = vrot.slane %v1876, 1
        %v1879 = vor.u32 %v1874, %v1878
        %v1881 = vshll.u32 %v1872, 16
        %v1883 = vrot.slane %v1881, 1
        %v1884 = vsel %vm231, %v1879, %v1883
        %v1887 = vunpack.c.l.b16 %v1861
        %v1888 = vpack.c.b16 %v1867, %v1887
        %v1889 = vrot.slane %v1888, 1
        %v1890 = vrot.slane %v1872, 1
        %v1891 = vsel %vm248, %v1889, %v1890
        %v1894 = vunpack.c.l.b16 %v1862
        %v1895 = vpack.c.b16 %v1894, %v1894
        %v1897 = vshrl.u32 %v1888, 16
        %v1899 = vrot.slane %v1897, 1
        %v1900 = vshll.u32 %v1888, 16
        %v1902 = vrot.slane %v1900, 2
        %v1903 = vor.u32 %v1899, %v1902
        %v1905 = vshrl.u32 %v1895, 16
        %v1907 = vrot.slane %v1905, 1
        %v1908 = vshll.u32 %v1895, 16
        %v1910 = vrot.slane %v1908, 2
        %v1911 = vor.u32 %v1907, %v1910
        %v1912 = vsel %vm256, %v1903, %v1911
        %v1915 = vunpack.c.l.b16 %v1863
        %v1916 = vpack.c.b16 %v1867, %v1915
        %v1917 = vrot.slane %v1916, 2
        %v1918 = vrot.slane %v1895, 2
        %v1919 = vsel %vm278, %v1917, %v1918
        %s1921 = scalar_lea.vmem [#allocation4], 960
        %v1922 = vld [vmem:[%s1921] sm:$0xf]
        %v1923 = vld [vmem:[%s1921 + $0x4] sm:$0xf]
        %v1924 = vld [vmem:[%s1921 + $0x8] sm:$0xf]
        %v1925 = vld [vmem:[%s1921 + $0xc] sm:$0xf]
        %v1926 = vld [vmem:[%s1921 + $0x10] sm:$0xf]
        %v1927 = vld [vmem:[%s1921 + $0x14] sm:$0xf]
        %v1928 = vld [vmem:[%s1921 + $0x18] sm:$0xf]
        %v1929 = vld [vmem:[%s1921 + $0x1c] sm:$0xf]
        %v1930 = vld [vmem:[%s1921 + $0x20] sm:$0xf]
        %v1931 = vld [vmem:[%s1921 + $0x24] sm:$0xf]
        %v1932 = vld [vmem:[%s1921 + $0x28] sm:$0xf]
        %v1933 = vld [vmem:[%s1921 + $0x2c] sm:$0xf]
        %v1934 = vld [vmem:[%s1921 + $0x30] sm:$0xf]
        %v1935 = vld [vmem:[%s1921 + $0x34] sm:$0xf]
        %v1936 = vld [vmem:[%s1921 + $0x38] sm:$0xf]
        %v1937 = vld [vmem:[%s1921 + $0x3c] sm:$0xf]
        %v1938 = vld [vmem:[%s1921 + $0x40] sm:$0xf]
        %v1939 = vld [vmem:[%s1921 + $0x44] sm:$0xf]
        %v1940 = vld [vmem:[%s1921 + $0x48] sm:$0xf]
        %v1941 = vld [vmem:[%s1921 + $0x4c] sm:$0xf]
        %v1942 = vld [vmem:[%s1921 + $0x50] sm:$0xf]
        %v1943 = vld [vmem:[%s1921 + $0x54] sm:$0xf]
        %v1944 = vld [vmem:[%s1921 + $0x58] sm:$0xf]
        %v1945 = vld [vmem:[%s1921 + $0x5c] sm:$0xf]
        %v1946 = vld [vmem:[%s1921 + $0x60] sm:$0xf]
        %v1947 = vld [vmem:[%s1921 + $0x64] sm:$0xf]
        %v1948 = vld [vmem:[%s1921 + $0x68] sm:$0xf]
        %v1949 = vld [vmem:[%s1921 + $0x6c] sm:$0xf]
        %v1950 = vld [vmem:[%s1921 + $0x70] sm:$0xf]
        %v1951 = vld [vmem:[%s1921 + $0x74] sm:$0xf]
        %v1952 = vld [vmem:[%s1921 + $0x78] sm:$0xf]
        %v1953 = vld [vmem:[%s1921 + $0x7c] sm:$0xf]
        %v1954 = vld [vmem:[%s1921 + $0x80] sm:$0xf]
        %v1955 = vld [vmem:[%s1921 + $0x84] sm:$0xf]
        %v1956 = vld [vmem:[%s1921 + $0x88] sm:$0xf]
        %v1957 = vld [vmem:[%s1921 + $0x8c] sm:$0xf]
        %v1958 = vld [vmem:[%s1921 + $0x90] sm:$0xf]
        %v1959 = vld [vmem:[%s1921 + $0x94] sm:$0xf]
        %v1960 = vld [vmem:[%s1921 + $0x98] sm:$0xf]
        %v1961 = vld [vmem:[%s1921 + $0x9c] sm:$0xf]
        %v1962 = vld [vmem:[%s1921 + $0xa0] sm:$0xf]
        %v1963 = vld [vmem:[%s1921 + $0xa4] sm:$0xf]
        %v1964 = vld [vmem:[%s1921 + $0xa8] sm:$0xf]
        %v1965 = vld [vmem:[%s1921 + $0xac] sm:$0xf]
        %v1966 = vld [vmem:[%s1921 + $0xb0] sm:$0xf]
        %v1967 = vld [vmem:[%s1921 + $0xb4] sm:$0xf]
        %v1968 = vld [vmem:[%s1921 + $0xb8] sm:$0xf]
        %v1969 = vld [vmem:[%s1921 + $0xbc] sm:$0xf]
        %v1970 = vld [vmem:[%s1921 + $0xc0] sm:$0xf]
        %v1971 = vld [vmem:[%s1921 + $0xc4] sm:$0xf]
        %v1972 = vld [vmem:[%s1921 + $0xc8] sm:$0xf]
        %v1973 = vld [vmem:[%s1921 + $0xcc] sm:$0xf]
        %v1974 = vld [vmem:[%s1921 + $0xd0] sm:$0xf]
        %v1975 = vld [vmem:[%s1921 + $0xd4] sm:$0xf]
        %v1976 = vld [vmem:[%s1921 + $0xd8] sm:$0xf]
        %v1977 = vld [vmem:[%s1921 + $0xdc] sm:$0xf]
        %v1978 = vld [vmem:[%s1921 + $0xe0] sm:$0xf]
        %v1979 = vld [vmem:[%s1921 + $0xe4] sm:$0xf]
        %v1980 = vld [vmem:[%s1921 + $0xe8] sm:$0xf]
        %v1981 = vld [vmem:[%s1921 + $0xec] sm:$0xf]
        %v1982 = vld [vmem:[%s1921 + $0xf0] sm:$0xf]
        %v1983 = vld [vmem:[%s1921 + $0xf4] sm:$0xf]
        %v1984 = vld [vmem:[%s1921 + $0xf8] sm:$0xf]
        %v1985 = vld [vmem:[%s1921 + $0xfc] sm:$0xf]
        %v1986 = vld [vmem:[%s1921 + $0x100] sm:$0xf]
        %v1987 = vld [vmem:[%s1921 + $0x104] sm:$0xf]
        %v1988 = vld [vmem:[%s1921 + $0x108] sm:$0xf]
        %v1989 = vld [vmem:[%s1921 + $0x10c] sm:$0xf]
        %v1990 = vld [vmem:[%s1921 + $0x110] sm:$0xf]
        %v1991 = vld [vmem:[%s1921 + $0x114] sm:$0xf]
        %v1992 = vld [vmem:[%s1921 + $0x118] sm:$0xf]
        %v1993 = vld [vmem:[%s1921 + $0x11c] sm:$0xf]
        %v1994 = vld [vmem:[%s1921 + $0x120] sm:$0xf]
        %v1995 = vld [vmem:[%s1921 + $0x124] sm:$0xf]
        %v1996 = vld [vmem:[%s1921 + $0x128] sm:$0xf]
        %v1997 = vld [vmem:[%s1921 + $0x12c] sm:$0xf]
        %v1998 = vld [vmem:[%s1921 + $0x130] sm:$0xf]
        %v1999 = vld [vmem:[%s1921 + $0x134] sm:$0xf]
        %v2000 = vld [vmem:[%s1921 + $0x138] sm:$0xf]
        %v2001 = vld [vmem:[%s1921 + $0x13c] sm:$0xf]
        %v2082 = vunpack.c.l.b16 %v1922
        %v2083 = vunpack.c.l.b16 %v1923
        %v2084 = vunpack.c.l.b16 %v1924
        %v2085 = vunpack.c.l.b16 %v1925
        %v2086 = vunpack.c.l.b16 %v1926
        %v2087 = vunpack.c.l.b16 %v1927
        %v2088 = vunpack.c.l.b16 %v1928
        %v2089 = vunpack.c.l.b16 %v1929
        %v2090 = vunpack.c.l.b16 %v1930
        %v2091 = vunpack.c.l.b16 %v1931
        %v2092 = vunpack.c.l.b16 %v1932
        %v2093 = vunpack.c.l.b16 %v1933
        %v2094 = vunpack.c.l.b16 %v1934
        %v2095 = vunpack.c.l.b16 %v1935
        %v2096 = vunpack.c.l.b16 %v1936
        %v2097 = vunpack.c.l.b16 %v1937
        %v2098 = vunpack.c.l.b16 %v1938
        %v2099 = vunpack.c.l.b16 %v1939
        %v2100 = vunpack.c.l.b16 %v1940
        %v2101 = vunpack.c.l.b16 %v1941
        %v2102 = vunpack.c.l.b16 %v1942
        %v2103 = vunpack.c.l.b16 %v1943
        %v2104 = vunpack.c.l.b16 %v1944
        %v2105 = vunpack.c.l.b16 %v1945
        %v2106 = vunpack.c.l.b16 %v1946
        %v2107 = vunpack.c.l.b16 %v1947
        %v2108 = vunpack.c.l.b16 %v1948
        %v2109 = vunpack.c.l.b16 %v1949
        %v2110 = vunpack.c.l.b16 %v1950
        %v2111 = vunpack.c.l.b16 %v1951
        %v2112 = vunpack.c.l.b16 %v1952
        %v2113 = vunpack.c.l.b16 %v1953
        %v2114 = vunpack.c.l.b16 %v1954
        %v2115 = vunpack.c.l.b16 %v1955
        %v2116 = vunpack.c.l.b16 %v1956
        %v2117 = vunpack.c.l.b16 %v1957
        %v2118 = vunpack.c.l.b16 %v1958
        %v2119 = vunpack.c.l.b16 %v1959
        %v2120 = vunpack.c.l.b16 %v1960
        %v2121 = vunpack.c.l.b16 %v1961
        %v2122 = vunpack.c.l.b16 %v1962
        %v2123 = vunpack.c.l.b16 %v1963
        %v2124 = vunpack.c.l.b16 %v1964
        %v2125 = vunpack.c.l.b16 %v1965
        %v2126 = vunpack.c.l.b16 %v1966
        %v2127 = vunpack.c.l.b16 %v1967
        %v2128 = vunpack.c.l.b16 %v1968
        %v2129 = vunpack.c.l.b16 %v1969
        %v2130 = vunpack.c.l.b16 %v1970
        %v2131 = vunpack.c.l.b16 %v1971
        %v2132 = vunpack.c.l.b16 %v1972
        %v2133 = vunpack.c.l.b16 %v1973
        %v2134 = vunpack.c.l.b16 %v1974
        %v2135 = vunpack.c.l.b16 %v1975
        %v2136 = vunpack.c.l.b16 %v1976
        %v2137 = vunpack.c.l.b16 %v1977
        %v2138 = vunpack.c.l.b16 %v1978
        %v2139 = vunpack.c.l.b16 %v1979
        %v2140 = vunpack.c.l.b16 %v1980
        %v2141 = vunpack.c.l.b16 %v1981
        %v2142 = vunpack.c.l.b16 %v1982
        %v2143 = vunpack.c.l.b16 %v1983
        %v2144 = vunpack.c.l.b16 %v1984
        %v2145 = vunpack.c.l.b16 %v1985
        %v2146 = vunpack.c.l.b16 %v1986
        %v2147 = vunpack.c.l.b16 %v1987
        %v2148 = vunpack.c.l.b16 %v1988
        %v2149 = vunpack.c.l.b16 %v1989
        %v2150 = vunpack.c.l.b16 %v1990
        %v2151 = vunpack.c.l.b16 %v1991
        %v2152 = vunpack.c.l.b16 %v1992
        %v2153 = vunpack.c.l.b16 %v1993
        %v2154 = vunpack.c.l.b16 %v1994
        %v2155 = vunpack.c.l.b16 %v1995
        %v2156 = vunpack.c.l.b16 %v1996
        %v2157 = vunpack.c.l.b16 %v1997
        %v2158 = vunpack.c.l.b16 %v1998
        %v2159 = vunpack.c.l.b16 %v1999
        %v2160 = vunpack.c.l.b16 %v2000
        %v2161 = vunpack.c.l.b16 %v2001
        %v2162 = vpack.c.b16 %v2083, %v2082
        %v2163 = vpack.c.b16 %v2085, %v2084
        %v2164 = vpack.c.b16 %v2087, %v2086
        %v2165 = vpack.c.b16 %v2089, %v2088
        %v2166 = vpack.c.b16 %v2091, %v2090
        %v2167 = vpack.c.b16 %v2093, %v2092
        %v2168 = vpack.c.b16 %v2095, %v2094
        %v2169 = vpack.c.b16 %v2097, %v2096
        %v2170 = vpack.c.b16 %v2099, %v2098
        %v2171 = vpack.c.b16 %v2101, %v2100
        %v2172 = vpack.c.b16 %v2103, %v2102
        %v2173 = vpack.c.b16 %v2105, %v2104
        %v2174 = vpack.c.b16 %v2107, %v2106
        %v2175 = vpack.c.b16 %v2109, %v2108
        %v2176 = vpack.c.b16 %v2111, %v2110
        %v2177 = vpack.c.b16 %v2113, %v2112
        %v2178 = vpack.c.b16 %v2115, %v2114
        %v2179 = vpack.c.b16 %v2117, %v2116
        %v2180 = vpack.c.b16 %v2119, %v2118
        %v2181 = vpack.c.b16 %v2121, %v2120
        %v2182 = vpack.c.b16 %v2123, %v2122
        %v2183 = vpack.c.b16 %v2125, %v2124
        %v2184 = vpack.c.b16 %v2127, %v2126
        %v2185 = vpack.c.b16 %v2129, %v2128
        %v2186 = vpack.c.b16 %v2131, %v2130
        %v2187 = vpack.c.b16 %v2133, %v2132
        %v2188 = vpack.c.b16 %v2135, %v2134
        %v2189 = vpack.c.b16 %v2137, %v2136
        %v2190 = vpack.c.b16 %v2139, %v2138
        %v2191 = vpack.c.b16 %v2141, %v2140
        %v2192 = vpack.c.b16 %v2143, %v2142
        %v2193 = vpack.c.b16 %v2145, %v2144
        %v2194 = vpack.c.b16 %v2147, %v2146
        %v2195 = vpack.c.b16 %v2149, %v2148
        %v2196 = vpack.c.b16 %v2151, %v2150
        %v2197 = vpack.c.b16 %v2153, %v2152
        %v2198 = vpack.c.b16 %v2155, %v2154
        %v2199 = vpack.c.b16 %v2157, %v2156
        %v2200 = vpack.c.b16 %v2159, %v2158
        %v2201 = vpack.c.b16 %v2161, %v2160
        %2242 = vmatprep.subr.bf16.mxu0 0
        %2243 = vmatpush1.bf16.msra.mxu0 %v2169
        %2244 = vmatprep.subr.bf16.mxu0 0
        %2245 = vmatpush1.bf16.msra.mxu0 %v2168
        %2246 = vmatprep.subr.bf16.mxu0 0
        %2247 = vmatpush1.bf16.msra.mxu0 %v2167
        %2248 = vmatprep.subr.bf16.mxu0 0
        %2249 = vmatpush1.bf16.msra.mxu0 %v2166
        %2250 = vmatprep.subr.bf16.mxu0 0
        %2251 = vmatpush1.bf16.msra.mxu0 %v2165
        %2252 = vmatprep.subr.bf16.mxu0 0
        %2253 = vmatpush1.bf16.msra.mxu0 %v2164
        %2254 = vmatprep.subr.bf16.mxu0 0
        %2255 = vmatpush1.bf16.msra.mxu0 %v2163
        %2256 = vmatprep.subr.bf16.mxu0 0
        %2257 = vmatpush1.bf16.msra.mxu0 %v2162
        %2258 = vmatprep.subr.bf16.mxu0 0
        %2259 = vmatpush2.bf16.msra.mxu0 %v2177
        %2260 = vmatprep.subr.bf16.mxu0 0
        %2261 = vmatpush2.bf16.msra.mxu0 %v2176
        %2262 = vmatprep.subr.bf16.mxu0 0
        %2263 = vmatpush2.bf16.msra.mxu0 %v2175
        %2264 = vmatprep.subr.bf16.mxu0 0
        %2265 = vmatpush2.bf16.msra.mxu0 %v2174
        %2266 = vmatprep.subr.bf16.mxu0 0
        %2267 = vmatpush2.bf16.msra.mxu0 %v2173
        %2268 = vmatprep.subr.bf16.mxu0 0
        %2269 = vmatpush2.bf16.msra.mxu0 %v2172
        %2270 = vmatprep.subr.bf16.mxu0 0
        %2271 = vmatpush2.bf16.msra.mxu0 %v2171
        %2272 = vmatprep.subr.bf16.mxu0 0
        %2273 = vmatpush2.bf16.msra.mxu0 %v2170
        %2274 = vmatprep.mubr.bf16.mxu0 %v1884
        %2275 = vmatmul.mubr.bf16.gmra.mxu0 %v1868
        %v2276 = vpop.f32.mrf.mxu0
        %v2277 = vadd.f32 0.0, %v2276
        %v2278 = vpop.f32.mrf.mxu0
        %v2279 = vpop.f32.mrf.mxu0
        %v2280 = vadd.f32 0.0, %v2279
        %v2281 = vpop.f32.mrf.mxu0
        %2282 = vdwg.mxu0
        %2283 = vmatprep.subr.bf16.mxu0 0
        %2284 = vmatpush1.bf16.msra.mxu0 %v2185
        %2285 = vmatprep.subr.bf16.mxu0 0
        %2286 = vmatpush1.bf16.msra.mxu0 %v2184
        %2287 = vmatprep.subr.bf16.mxu0 0
        %2288 = vmatpush1.bf16.msra.mxu0 %v2183
        %2289 = vmatprep.subr.bf16.mxu0 0
        %2290 = vmatpush1.bf16.msra.mxu0 %v2182
        %2291 = vmatprep.subr.bf16.mxu0 0
        %2292 = vmatpush1.bf16.msra.mxu0 %v2181
        %2293 = vmatprep.subr.bf16.mxu0 0
        %2294 = vmatpush1.bf16.msra.mxu0 %v2180
        %2295 = vmatprep.subr.bf16.mxu0 0
        %2296 = vmatpush1.bf16.msra.mxu0 %v2179
        %2297 = vmatprep.subr.bf16.mxu0 0
        %2298 = vmatpush1.bf16.msra.mxu0 %v2178
        %2299 = vmatprep.subr.bf16.mxu0 0
        %2300 = vmatpush2.bf16.msra.mxu0 %v2193
        %2301 = vmatprep.subr.bf16.mxu0 0
        %2302 = vmatpush2.bf16.msra.mxu0 %v2192
        %2303 = vmatprep.subr.bf16.mxu0 0
        %2304 = vmatpush2.bf16.msra.mxu0 %v2191
        %2305 = vmatprep.subr.bf16.mxu0 0
        %2306 = vmatpush2.bf16.msra.mxu0 %v2190
        %2307 = vmatprep.subr.bf16.mxu0 0
        %2308 = vmatpush2.bf16.msra.mxu0 %v2189
        %2309 = vmatprep.subr.bf16.mxu0 0
        %2310 = vmatpush2.bf16.msra.mxu0 %v2188
        %2311 = vmatprep.subr.bf16.mxu0 0
        %2312 = vmatpush2.bf16.msra.mxu0 %v2187
        %2313 = vmatprep.subr.bf16.mxu0 0
        %2314 = vmatpush2.bf16.msra.mxu0 %v2186
        %2315 = vmatprep.mubr.bf16.mxu0 %v1912
        %2316 = vmatmul.mubr.bf16.gmra.mxu0 %v1891
        %v2317 = vpop.f32.mrf.mxu0
        %v2318 = vadd.f32 %v2277, %v2317
        %v2319 = vpop.f32.mrf.mxu0
        %v2320 = vpop.f32.mrf.mxu0
        %v2321 = vadd.f32 %v2280, %v2320
        %v2322 = vpop.f32.mrf.mxu0
        %2323 = vdwg.mxu0
        %2324 = vmatprep.subr.bf16.mxu0 0
        %2325 = vmatpush1.bf16.msra.mxu0 %v2201
        %2326 = vmatprep.subr.bf16.mxu0 0
        %2327 = vmatpush1.bf16.msra.mxu0 %v2200
        %2328 = vmatprep.subr.bf16.mxu0 0
        %2329 = vmatpush1.bf16.msra.mxu0 %v2199
        %2330 = vmatprep.subr.bf16.mxu0 0
        %2331 = vmatpush1.bf16.msra.mxu0 %v2198
        %2332 = vmatprep.subr.bf16.mxu0 0
        %2333 = vmatpush1.bf16.msra.mxu0 %v2197
        %2334 = vmatprep.subr.bf16.mxu0 0
        %2335 = vmatpush1.bf16.msra.mxu0 %v2196
        %2336 = vmatprep.subr.bf16.mxu0 0
        %2337 = vmatpush1.bf16.msra.mxu0 %v2195
        %2338 = vmatprep.subr.bf16.mxu0 0
        %2339 = vmatpush1.bf16.msra.mxu0 %v2194
        %2340 = vmatprep.subr.bf16.mxu0 0
        %2341 = vmatpush2.bf16.msra.mxu0 0
        %2342 = vmatprep.subr.bf16.mxu0 0
        %2343 = vmatpush2.bf16.msra.mxu0 0
        %2344 = vmatprep.subr.bf16.mxu0 0
        %2345 = vmatpush2.bf16.msra.mxu0 0
        %2346 = vmatprep.subr.bf16.mxu0 0
        %2347 = vmatpush2.bf16.msra.mxu0 0
        %2348 = vmatprep.subr.bf16.mxu0 0
        %2349 = vmatpush2.bf16.msra.mxu0 0
        %2350 = vmatprep.subr.bf16.mxu0 0
        %2351 = vmatpush2.bf16.msra.mxu0 0
        %2352 = vmatprep.subr.bf16.mxu0 0
        %2353 = vmatpush2.bf16.msra.mxu0 0
        %2354 = vmatprep.subr.bf16.mxu0 0
        %2355 = vmatpush2.bf16.msra.mxu0 0
        %2356 = vmatprep.mubr.bf16.mxu0 0
        %2357 = vmatmul.mubr.bf16.gmra.mxu0 %v1919
        %v2358 = vpop.f32.mrf.mxu0
        %v2359 = vadd.f32 %v2318, %v2358
        %v2360 = vpop.f32.mrf.mxu0
        %v2361 = vpop.f32.mrf.mxu0
        %v2362 = vadd.f32 %v2321, %v2361
        %v2363 = vpop.f32.mrf.mxu0
        %2364 = vdwg.mxu0
        %s2365 = scalar_lea.vmem %s2, 3
        %v2366 = vld [vmem:[%s2365] sm:$0x1]
        %v2368 = vlaneseq
        %v2369 = vshrl.u32 %v2368, 7
        %v2370 = vsub.s32 0, %v2369
        %v2371 = vrot.slane %v2366, %v2370
        %v2373 = vmul.f32 %v2359, %v2371
        %v2374 = vmul.f32 %v2362, %v2371
        %s2375 = scalar_lea.vmem %s3, 3
        %v2376 = vld [vmem:[%s2375] sm:$0x1]
        %v2378 = vlaneseq
        %v2379 = vshrl.u32 %v2378, 7
        %v2380 = vsub.s32 0, %v2379
        %v2381 = vrot.slane %v2376, %v2380
        %v2383 = vadd.f32 %v2373, %v2381
        %v2384 = vadd.f32 %v2374, %v2381
        %v2385 = vtanh.pop %v2383
        %v2386 = vtanh.pop %v2384
        %v2387 = vpack.c.bf16 %v2386, %v2385
        %v2389 = vunpack.c.l.b16 %v2387
        %v2390 = vunpack.c.h.b16 %v2387
        %v2391 = vpack.c.b16 %v2389, %v2389
        %v2392 = vpack.c.b16 %v2390, %v2390
        %v2393 = vrot.slane %v2391, 7
        %v2394 = vrot.slane %v2393, 4
        %v2395 = vrot.slane %v2392, 7
        %v2396 = vsel %vm754, %v2394, %v2395
        %v2397 = vrot.slane %v2395, 4
        %2401 = vst [vmem:[#allocation3] sm:$0xe] %v2393
        %2402 = vst [vmem:[#allocation3 + $0x4] sm:$0xf] %v2396
        %2403 = vst [vmem:[#allocation3 + $0x8] sm:$0x1] %v2397
        %v2404 = vld [vmem:[#allocation3] sm:$0xf]
        %v2405 = vld [vmem:[#allocation3 + $0x4] sm:$0xf]
        %v2406 = vld [vmem:[#allocation3 + $0x8] sm:$0x1]
        %v2407 = vld [vmem:[#allocation3] sm:$0xe]
        %v2408 = vld [vmem:[#allocation3 + $0x8] sm:$0x3]
        %v2409 = vld [vmem:[#allocation3] sm:$0xc]
        %v2412 = vunpack.c.l.b16 %v2404
        %v2413 = vunpack.c.l.b16 %v2405
        %v2414 = vpack.c.b16 %v2413, %v2412
        %v2417 = vunpack.c.l.b16 %v2406
        %v2418 = vpack.c.b16 %v2417, %v2417
        %v2420 = vshrl.u32 %v2414, 16
        %v2422 = vshll.u32 %v2414, 16
        %v2424 = vrot.slane %v2422, 1
        %v2425 = vor.u32 %v2420, %v2424
        %v2427 = vshll.u32 %v2418, 16
        %v2429 = vrot.slane %v2427, 1
        %v2430 = vsel %vm231, %v2425, %v2429
        %v2433 = vunpack.c.l.b16 %v2407
        %v2434 = vpack.c.b16 %v2413, %v2433
        %v2435 = vrot.slane %v2434, 1
        %v2436 = vrot.slane %v2418, 1
        %v2437 = vsel %vm248, %v2435, %v2436
        %v2440 = vunpack.c.l.b16 %v2408
        %v2441 = vpack.c.b16 %v2440, %v2440
        %v2443 = vshrl.u32 %v2434, 16
        %v2445 = vrot.slane %v2443, 1
        %v2446 = vshll.u32 %v2434, 16
        %v2448 = vrot.slane %v2446, 2
        %v2449 = vor.u32 %v2445, %v2448
        %v2451 = vshrl.u32 %v2441, 16
        %v2453 = vrot.slane %v2451, 1
        %v2454 = vshll.u32 %v2441, 16
        %v2456 = vrot.slane %v2454, 2
        %v2457 = vor.u32 %v2453, %v2456
        %v2458 = vsel %vm256, %v2449, %v2457
        %v2461 = vunpack.c.l.b16 %v2409
        %v2462 = vpack.c.b16 %v2413, %v2461
        %v2463 = vrot.slane %v2462, 2
        %v2464 = vrot.slane %v2441, 2
        %v2465 = vsel %vm278, %v2463, %v2464
        %s2467 = scalar_lea.vmem [#allocation4], 1280
        %v2468 = vld [vmem:[%s2467] sm:$0xf]
        %v2469 = vld [vmem:[%s2467 + $0x4] sm:$0xf]
        %v2470 = vld [vmem:[%s2467 + $0x8] sm:$0xf]
        %v2471 = vld [vmem:[%s2467 + $0xc] sm:$0xf]
        %v2472 = vld [vmem:[%s2467 + $0x10] sm:$0xf]
        %v2473 = vld [vmem:[%s2467 + $0x14] sm:$0xf]
        %v2474 = vld [vmem:[%s2467 + $0x18] sm:$0xf]
        %v2475 = vld [vmem:[%s2467 + $0x1c] sm:$0xf]
        %v2476 = vld [vmem:[%s2467 + $0x20] sm:$0xf]
        %v2477 = vld [vmem:[%s2467 + $0x24] sm:$0xf]
        %v2478 = vld [vmem:[%s2467 + $0x28] sm:$0xf]
        %v2479 = vld [vmem:[%s2467 + $0x2c] sm:$0xf]
        %v2480 = vld [vmem:[%s2467 + $0x30] sm:$0xf]
        %v2481 = vld [vmem:[%s2467 + $0x34] sm:$0xf]
        %v2482 = vld [vmem:[%s2467 + $0x38] sm:$0xf]
        %v2483 = vld [vmem:[%s2467 + $0x3c] sm:$0xf]
        %v2484 = vld [vmem:[%s2467 + $0x40] sm:$0xf]
        %v2485 = vld [vmem:[%s2467 + $0x44] sm:$0xf]
        %v2486 = vld [vmem:[%s2467 + $0x48] sm:$0xf]
        %v2487 = vld [vmem:[%s2467 + $0x4c] sm:$0xf]
        %v2488 = vld [vmem:[%s2467 + $0x50] sm:$0xf]
        %v2489 = vld [vmem:[%s2467 + $0x54] sm:$0xf]
        %v2490 = vld [vmem:[%s2467 + $0x58] sm:$0xf]
        %v2491 = vld [vmem:[%s2467 + $0x5c] sm:$0xf]
        %v2492 = vld [vmem:[%s2467 + $0x60] sm:$0xf]
        %v2493 = vld [vmem:[%s2467 + $0x64] sm:$0xf]
        %v2494 = vld [vmem:[%s2467 + $0x68] sm:$0xf]
        %v2495 = vld [vmem:[%s2467 + $0x6c] sm:$0xf]
        %v2496 = vld [vmem:[%s2467 + $0x70] sm:$0xf]
        %v2497 = vld [vmem:[%s2467 + $0x74] sm:$0xf]
        %v2498 = vld [vmem:[%s2467 + $0x78] sm:$0xf]
        %v2499 = vld [vmem:[%s2467 + $0x7c] sm:$0xf]
        %v2500 = vld [vmem:[%s2467 + $0x80] sm:$0xf]
        %v2501 = vld [vmem:[%s2467 + $0x84] sm:$0xf]
        %v2502 = vld [vmem:[%s2467 + $0x88] sm:$0xf]
        %v2503 = vld [vmem:[%s2467 + $0x8c] sm:$0xf]
        %v2504 = vld [vmem:[%s2467 + $0x90] sm:$0xf]
        %v2505 = vld [vmem:[%s2467 + $0x94] sm:$0xf]
        %v2506 = vld [vmem:[%s2467 + $0x98] sm:$0xf]
        %v2507 = vld [vmem:[%s2467 + $0x9c] sm:$0xf]
        %v2508 = vld [vmem:[%s2467 + $0xa0] sm:$0xf]
        %v2509 = vld [vmem:[%s2467 + $0xa4] sm:$0xf]
        %v2510 = vld [vmem:[%s2467 + $0xa8] sm:$0xf]
        %v2511 = vld [vmem:[%s2467 + $0xac] sm:$0xf]
        %v2512 = vld [vmem:[%s2467 + $0xb0] sm:$0xf]
        %v2513 = vld [vmem:[%s2467 + $0xb4] sm:$0xf]
        %v2514 = vld [vmem:[%s2467 + $0xb8] sm:$0xf]
        %v2515 = vld [vmem:[%s2467 + $0xbc] sm:$0xf]
        %v2516 = vld [vmem:[%s2467 + $0xc0] sm:$0xf]
        %v2517 = vld [vmem:[%s2467 + $0xc4] sm:$0xf]
        %v2518 = vld [vmem:[%s2467 + $0xc8] sm:$0xf]
        %v2519 = vld [vmem:[%s2467 + $0xcc] sm:$0xf]
        %v2520 = vld [vmem:[%s2467 + $0xd0] sm:$0xf]
        %v2521 = vld [vmem:[%s2467 + $0xd4] sm:$0xf]
        %v2522 = vld [vmem:[%s2467 + $0xd8] sm:$0xf]
        %v2523 = vld [vmem:[%s2467 + $0xdc] sm:$0xf]
        %v2524 = vld [vmem:[%s2467 + $0xe0] sm:$0xf]
        %v2525 = vld [vmem:[%s2467 + $0xe4] sm:$0xf]
        %v2526 = vld [vmem:[%s2467 + $0xe8] sm:$0xf]
        %v2527 = vld [vmem:[%s2467 + $0xec] sm:$0xf]
        %v2528 = vld [vmem:[%s2467 + $0xf0] sm:$0xf]
        %v2529 = vld [vmem:[%s2467 + $0xf4] sm:$0xf]
        %v2530 = vld [vmem:[%s2467 + $0xf8] sm:$0xf]
        %v2531 = vld [vmem:[%s2467 + $0xfc] sm:$0xf]
        %v2532 = vld [vmem:[%s2467 + $0x100] sm:$0xf]
        %v2533 = vld [vmem:[%s2467 + $0x104] sm:$0xf]
        %v2534 = vld [vmem:[%s2467 + $0x108] sm:$0xf]
        %v2535 = vld [vmem:[%s2467 + $0x10c] sm:$0xf]
        %v2536 = vld [vmem:[%s2467 + $0x110] sm:$0xf]
        %v2537 = vld [vmem:[%s2467 + $0x114] sm:$0xf]
        %v2538 = vld [vmem:[%s2467 + $0x118] sm:$0xf]
        %v2539 = vld [vmem:[%s2467 + $0x11c] sm:$0xf]
        %v2540 = vld [vmem:[%s2467 + $0x120] sm:$0xf]
        %v2541 = vld [vmem:[%s2467 + $0x124] sm:$0xf]
        %v2542 = vld [vmem:[%s2467 + $0x128] sm:$0xf]
        %v2543 = vld [vmem:[%s2467 + $0x12c] sm:$0xf]
        %v2544 = vld [vmem:[%s2467 + $0x130] sm:$0xf]
        %v2545 = vld [vmem:[%s2467 + $0x134] sm:$0xf]
        %v2546 = vld [vmem:[%s2467 + $0x138] sm:$0xf]
        %v2547 = vld [vmem:[%s2467 + $0x13c] sm:$0xf]
        %v2628 = vunpack.c.l.b16 %v2468
        %v2629 = vunpack.c.l.b16 %v2469
        %v2630 = vunpack.c.l.b16 %v2470
        %v2631 = vunpack.c.l.b16 %v2471
        %v2632 = vunpack.c.l.b16 %v2472
        %v2633 = vunpack.c.l.b16 %v2473
        %v2634 = vunpack.c.l.b16 %v2474
        %v2635 = vunpack.c.l.b16 %v2475
        %v2636 = vunpack.c.l.b16 %v2476
        %v2637 = vunpack.c.l.b16 %v2477
        %v2638 = vunpack.c.l.b16 %v2478
        %v2639 = vunpack.c.l.b16 %v2479
        %v2640 = vunpack.c.l.b16 %v2480
        %v2641 = vunpack.c.l.b16 %v2481
        %v2642 = vunpack.c.l.b16 %v2482
        %v2643 = vunpack.c.l.b16 %v2483
        %v2644 = vunpack.c.l.b16 %v2484
        %v2645 = vunpack.c.l.b16 %v2485
        %v2646 = vunpack.c.l.b16 %v2486
        %v2647 = vunpack.c.l.b16 %v2487
        %v2648 = vunpack.c.l.b16 %v2488
        %v2649 = vunpack.c.l.b16 %v2489
        %v2650 = vunpack.c.l.b16 %v2490
        %v2651 = vunpack.c.l.b16 %v2491
        %v2652 = vunpack.c.l.b16 %v2492
        %v2653 = vunpack.c.l.b16 %v2493
        %v2654 = vunpack.c.l.b16 %v2494
        %v2655 = vunpack.c.l.b16 %v2495
        %v2656 = vunpack.c.l.b16 %v2496
        %v2657 = vunpack.c.l.b16 %v2497
        %v2658 = vunpack.c.l.b16 %v2498
        %v2659 = vunpack.c.l.b16 %v2499
        %v2660 = vunpack.c.l.b16 %v2500
        %v2661 = vunpack.c.l.b16 %v2501
        %v2662 = vunpack.c.l.b16 %v2502
        %v2663 = vunpack.c.l.b16 %v2503
        %v2664 = vunpack.c.l.b16 %v2504
        %v2665 = vunpack.c.l.b16 %v2505
        %v2666 = vunpack.c.l.b16 %v2506
        %v2667 = vunpack.c.l.b16 %v2507
        %v2668 = vunpack.c.l.b16 %v2508
        %v2669 = vunpack.c.l.b16 %v2509
        %v2670 = vunpack.c.l.b16 %v2510
        %v2671 = vunpack.c.l.b16 %v2511
        %v2672 = vunpack.c.l.b16 %v2512
        %v2673 = vunpack.c.l.b16 %v2513
        %v2674 = vunpack.c.l.b16 %v2514
        %v2675 = vunpack.c.l.b16 %v2515
        %v2676 = vunpack.c.l.b16 %v2516
        %v2677 = vunpack.c.l.b16 %v2517
        %v2678 = vunpack.c.l.b16 %v2518
        %v2679 = vunpack.c.l.b16 %v2519
        %v2680 = vunpack.c.l.b16 %v2520
        %v2681 = vunpack.c.l.b16 %v2521
        %v2682 = vunpack.c.l.b16 %v2522
        %v2683 = vunpack.c.l.b16 %v2523
        %v2684 = vunpack.c.l.b16 %v2524
        %v2685 = vunpack.c.l.b16 %v2525
        %v2686 = vunpack.c.l.b16 %v2526
        %v2687 = vunpack.c.l.b16 %v2527
        %v2688 = vunpack.c.l.b16 %v2528
        %v2689 = vunpack.c.l.b16 %v2529
        %v2690 = vunpack.c.l.b16 %v2530
        %v2691 = vunpack.c.l.b16 %v2531
        %v2692 = vunpack.c.l.b16 %v2532
        %v2693 = vunpack.c.l.b16 %v2533
        %v2694 = vunpack.c.l.b16 %v2534
        %v2695 = vunpack.c.l.b16 %v2535
        %v2696 = vunpack.c.l.b16 %v2536
        %v2697 = vunpack.c.l.b16 %v2537
        %v2698 = vunpack.c.l.b16 %v2538
        %v2699 = vunpack.c.l.b16 %v2539
        %v2700 = vunpack.c.l.b16 %v2540
        %v2701 = vunpack.c.l.b16 %v2541
        %v2702 = vunpack.c.l.b16 %v2542
        %v2703 = vunpack.c.l.b16 %v2543
        %v2704 = vunpack.c.l.b16 %v2544
        %v2705 = vunpack.c.l.b16 %v2545
        %v2706 = vunpack.c.l.b16 %v2546
        %v2707 = vunpack.c.l.b16 %v2547
        %v2708 = vpack.c.b16 %v2629, %v2628
        %v2709 = vpack.c.b16 %v2631, %v2630
        %v2710 = vpack.c.b16 %v2633, %v2632
        %v2711 = vpack.c.b16 %v2635, %v2634
        %v2712 = vpack.c.b16 %v2637, %v2636
        %v2713 = vpack.c.b16 %v2639, %v2638
        %v2714 = vpack.c.b16 %v2641, %v2640
        %v2715 = vpack.c.b16 %v2643, %v2642
        %v2716 = vpack.c.b16 %v2645, %v2644
        %v2717 = vpack.c.b16 %v2647, %v2646
        %v2718 = vpack.c.b16 %v2649, %v2648
        %v2719 = vpack.c.b16 %v2651, %v2650
        %v2720 = vpack.c.b16 %v2653, %v2652
        %v2721 = vpack.c.b16 %v2655, %v2654
        %v2722 = vpack.c.b16 %v2657, %v2656
        %v2723 = vpack.c.b16 %v2659, %v2658
        %v2724 = vpack.c.b16 %v2661, %v2660
        %v2725 = vpack.c.b16 %v2663, %v2662
        %v2726 = vpack.c.b16 %v2665, %v2664
        %v2727 = vpack.c.b16 %v2667, %v2666
        %v2728 = vpack.c.b16 %v2669, %v2668
        %v2729 = vpack.c.b16 %v2671, %v2670
        %v2730 = vpack.c.b16 %v2673, %v2672
        %v2731 = vpack.c.b16 %v2675, %v2674
        %v2732 = vpack.c.b16 %v2677, %v2676
        %v2733 = vpack.c.b16 %v2679, %v2678
        %v2734 = vpack.c.b16 %v2681, %v2680
        %v2735 = vpack.c.b16 %v2683, %v2682
        %v2736 = vpack.c.b16 %v2685, %v2684
        %v2737 = vpack.c.b16 %v2687, %v2686
        %v2738 = vpack.c.b16 %v2689, %v2688
        %v2739 = vpack.c.b16 %v2691, %v2690
        %v2740 = vpack.c.b16 %v2693, %v2692
        %v2741 = vpack.c.b16 %v2695, %v2694
        %v2742 = vpack.c.b16 %v2697, %v2696
        %v2743 = vpack.c.b16 %v2699, %v2698
        %v2744 = vpack.c.b16 %v2701, %v2700
        %v2745 = vpack.c.b16 %v2703, %v2702
        %v2746 = vpack.c.b16 %v2705, %v2704
        %v2747 = vpack.c.b16 %v2707, %v2706
        %2788 = vmatprep.subr.bf16.mxu0 0
        %2789 = vmatpush1.bf16.msra.mxu0 %v2715
        %2790 = vmatprep.subr.bf16.mxu0 0
        %2791 = vmatpush1.bf16.msra.mxu0 %v2714
        %2792 = vmatprep.subr.bf16.mxu0 0
        %2793 = vmatpush1.bf16.msra.mxu0 %v2713
        %2794 = vmatprep.subr.bf16.mxu0 0
        %2795 = vmatpush1.bf16.msra.mxu0 %v2712
        %2796 = vmatprep.subr.bf16.mxu0 0
        %2797 = vmatpush1.bf16.msra.mxu0 %v2711
        %2798 = vmatprep.subr.bf16.mxu0 0
        %2799 = vmatpush1.bf16.msra.mxu0 %v2710
        %2800 = vmatprep.subr.bf16.mxu0 0
        %2801 = vmatpush1.bf16.msra.mxu0 %v2709
        %2802 = vmatprep.subr.bf16.mxu0 0
        %2803 = vmatpush1.bf16.msra.mxu0 %v2708
        %2804 = vmatprep.subr.bf16.mxu0 0
        %2805 = vmatpush2.bf16.msra.mxu0 %v2723
        %2806 = vmatprep.subr.bf16.mxu0 0
        %2807 = vmatpush2.bf16.msra.mxu0 %v2722
        %2808 = vmatprep.subr.bf16.mxu0 0
        %2809 = vmatpush2.bf16.msra.mxu0 %v2721
        %2810 = vmatprep.subr.bf16.mxu0 0
        %2811 = vmatpush2.bf16.msra.mxu0 %v2720
        %2812 = vmatprep.subr.bf16.mxu0 0
        %2813 = vmatpush2.bf16.msra.mxu0 %v2719
        %2814 = vmatprep.subr.bf16.mxu0 0
        %2815 = vmatpush2.bf16.msra.mxu0 %v2718
        %2816 = vmatprep.subr.bf16.mxu0 0
        %2817 = vmatpush2.bf16.msra.mxu0 %v2717
        %2818 = vmatprep.subr.bf16.mxu0 0
        %2819 = vmatpush2.bf16.msra.mxu0 %v2716
        %2820 = vmatprep.mubr.bf16.mxu0 %v2430
        %2821 = vmatmul.mubr.bf16.gmra.mxu0 %v2414
        %v2822 = vpop.f32.mrf.mxu0
        %v2823 = vadd.f32 0.0, %v2822
        %v2824 = vpop.f32.mrf.mxu0
        %v2825 = vpop.f32.mrf.mxu0
        %v2826 = vadd.f32 0.0, %v2825
        %v2827 = vpop.f32.mrf.mxu0
        %2828 = vdwg.mxu0
        %2829 = vmatprep.subr.bf16.mxu0 0
        %2830 = vmatpush1.bf16.msra.mxu0 %v2731
        %2831 = vmatprep.subr.bf16.mxu0 0
        %2832 = vmatpush1.bf16.msra.mxu0 %v2730
        %2833 = vmatprep.subr.bf16.mxu0 0
        %2834 = vmatpush1.bf16.msra.mxu0 %v2729
        %2835 = vmatprep.subr.bf16.mxu0 0
        %2836 = vmatpush1.bf16.msra.mxu0 %v2728
        %2837 = vmatprep.subr.bf16.mxu0 0
        %2838 = vmatpush1.bf16.msra.mxu0 %v2727
        %2839 = vmatprep.subr.bf16.mxu0 0
        %2840 = vmatpush1.bf16.msra.mxu0 %v2726
        %2841 = vmatprep.subr.bf16.mxu0 0
        %2842 = vmatpush1.bf16.msra.mxu0 %v2725
        %2843 = vmatprep.subr.bf16.mxu0 0
        %2844 = vmatpush1.bf16.msra.mxu0 %v2724
        %2845 = vmatprep.subr.bf16.mxu0 0
        %2846 = vmatpush2.bf16.msra.mxu0 %v2739
        %2847 = vmatprep.subr.bf16.mxu0 0
        %2848 = vmatpush2.bf16.msra.mxu0 %v2738
        %2849 = vmatprep.subr.bf16.mxu0 0
        %2850 = vmatpush2.bf16.msra.mxu0 %v2737
        %2851 = vmatprep.subr.bf16.mxu0 0
        %2852 = vmatpush2.bf16.msra.mxu0 %v2736
        %2853 = vmatprep.subr.bf16.mxu0 0
        %2854 = vmatpush2.bf16.msra.mxu0 %v2735
        %2855 = vmatprep.subr.bf16.mxu0 0
        %2856 = vmatpush2.bf16.msra.mxu0 %v2734
        %2857 = vmatprep.subr.bf16.mxu0 0
        %2858 = vmatpush2.bf16.msra.mxu0 %v2733
        %2859 = vmatprep.subr.bf16.mxu0 0
        %2860 = vmatpush2.bf16.msra.mxu0 %v2732
        %2861 = vmatprep.mubr.bf16.mxu0 %v2458
        %2862 = vmatmul.mubr.bf16.gmra.mxu0 %v2437
        %v2863 = vpop.f32.mrf.mxu0
        %v2864 = vadd.f32 %v2823, %v2863
        %v2865 = vpop.f32.mrf.mxu0
        %v2866 = vpop.f32.mrf.mxu0
        %v2867 = vadd.f32 %v2826, %v2866
        %v2868 = vpop.f32.mrf.mxu0
        %2869 = vdwg.mxu0
        %2870 = vmatprep.subr.bf16.mxu0 0
        %2871 = vmatpush1.bf16.msra.mxu0 %v2747
        %2872 = vmatprep.subr.bf16.mxu0 0
        %2873 = vmatpush1.bf16.msra.mxu0 %v2746
        %2874 = vmatprep.subr.bf16.mxu0 0
        %2875 = vmatpush1.bf16.msra.mxu0 %v2745
        %2876 = vmatprep.subr.bf16.mxu0 0
        %2877 = vmatpush1.bf16.msra.mxu0 %v2744
        %2878 = vmatprep.subr.bf16.mxu0 0
        %2879 = vmatpush1.bf16.msra.mxu0 %v2743
        %2880 = vmatprep.subr.bf16.mxu0 0
        %2881 = vmatpush1.bf16.msra.mxu0 %v2742
        %2882 = vmatprep.subr.bf16.mxu0 0
        %2883 = vmatpush1.bf16.msra.mxu0 %v2741
        %2884 = vmatprep.subr.bf16.mxu0 0
        %2885 = vmatpush1.bf16.msra.mxu0 %v2740
        %2886 = vmatprep.subr.bf16.mxu0 0
        %2887 = vmatpush2.bf16.msra.mxu0 0
        %2888 = vmatprep.subr.bf16.mxu0 0
        %2889 = vmatpush2.bf16.msra.mxu0 0
        %2890 = vmatprep.subr.bf16.mxu0 0
        %2891 = vmatpush2.bf16.msra.mxu0 0
        %2892 = vmatprep.subr.bf16.mxu0 0
        %2893 = vmatpush2.bf16.msra.mxu0 0
        %2894 = vmatprep.subr.bf16.mxu0 0
        %2895 = vmatpush2.bf16.msra.mxu0 0
        %2896 = vmatprep.subr.bf16.mxu0 0
        %2897 = vmatpush2.bf16.msra.mxu0 0
        %2898 = vmatprep.subr.bf16.mxu0 0
        %2899 = vmatpush2.bf16.msra.mxu0 0
        %2900 = vmatprep.subr.bf16.mxu0 0
        %2901 = vmatpush2.bf16.msra.mxu0 0
        %2902 = vmatprep.mubr.bf16.mxu0 0
        %2903 = vmatmul.mubr.bf16.gmra.mxu0 %v2465
        %v2904 = vpop.f32.mrf.mxu0
        %v2905 = vadd.f32 %v2864, %v2904
        %v2906 = vpop.f32.mrf.mxu0
        %v2907 = vpop.f32.mrf.mxu0
        %v2908 = vadd.f32 %v2867, %v2907
        %v2909 = vpop.f32.mrf.mxu0
        %2910 = vdwg.mxu0
        %s2911 = scalar_lea.vmem %s2, 4
        %v2912 = vld [vmem:[%s2911] sm:$0x1]
        %v2914 = vlaneseq
        %v2915 = vshrl.u32 %v2914, 7
        %v2916 = vsub.s32 0, %v2915
        %v2917 = vrot.slane %v2912, %v2916
        %v2919 = vmul.f32 %v2905, %v2917
        %v2920 = vmul.f32 %v2908, %v2917
        %s2921 = scalar_lea.vmem %s3, 4
        %v2922 = vld [vmem:[%s2921] sm:$0x1]
        %v2924 = vlaneseq
        %v2925 = vshrl.u32 %v2924, 7
        %v2926 = vsub.s32 0, %v2925
        %v2927 = vrot.slane %v2922, %v2926
        %v2929 = vadd.f32 %v2919, %v2927
        %v2930 = vadd.f32 %v2920, %v2927
        %2931 = vst [vmem:[%s205] sm:$0xff] %v2929
        %2932 = vst [vmem:[%s205 + $0x8] sm:$0xff] %v2930
        %s2933 = sand.u32 %s116, 1
        %s2934 = scalar_lea.sflag [#allocation6], %s2933
        %s2935 = sand.u32 %s116, 1
        %s2936 = smul.addr %s2935, 16
        %s2937 = scalar_lea.vmem [#allocation7], %s2936
        // Predicated region
        $region41: #{tpu_custom_call.1} parent=35 // pred_check
          %p2938 = pneg %p126
        $region42: #{tpu_custom_call.1} parent=35 // pred_check_branch
          %2940 = sbr.rel (%p2938) target = $region44
        $region43: #{tpu_custom_call.1} parent=35 // pred_region
          %s2942 = ssub.s32 256, 256
          %2943 = vsyncadd %s2934, %s2942
          %s2944 = smul.addr %s19, 2
          %s2945 = smul.addr %s2944, 128
          %s2946 = scalar_lea.hbm %s4, %s2945
          %s2947 = sshll.u32 %s2937, 4
          %s2948 = int_to_ptr.vmem [resolvable:$true] %s2947
          %2953 = dma.vmem_to_hbm [thread:$0]  %s2948, 256, %s2946, %s2934, 128, 128, 8
        $region44: #{tpu_custom_call.1} parent=35 // pred_fallthru
          _
      $region36: #{tpu_custom_call.1} parent=5 // pred_fallthru
        _
      %p2954 = scmp.le.s32.totalorder 2, %s14
      // Predicated region
      $region45: #{tpu_custom_call.1} parent=5 // pred_check
        %p2955 = pneg %p2954
      $region46: #{tpu_custom_call.1} parent=5 // pred_check_branch
        %2957 = sbr.rel (%p2955) target = $region48
      $region47: #{tpu_custom_call.1} parent=5 // pred_region
        %s2958 = ssub.s32 %s14, 2
        // Predicated region
        $region49: #{tpu_custom_call.1} parent=47 // pred_check
          %p2959 = pneg %p132
        $region50: #{tpu_custom_call.1} parent=47 // pred_check_branch
          %2961 = sbr.rel (%p2959) target = $region52
        $region51: #{tpu_custom_call.1} parent=47 // pred_region
          %s2962 = sand.u32 %s117, 1
          %s2963 = scalar_lea.sflag [#allocation6], %s2962
          %s2964 = sand.u32 %s117, 1
          %s2965 = smul.addr %s2964, 16
          %s2966 = scalar_lea.vmem [#allocation7], %s2965
          %2967 = dma.done %s2963, 256
        $region52: #{tpu_custom_call.1} parent=47 // pred_fallthru
          _
      $region48: #{tpu_custom_call.1} parent=5 // pred_fallthru
        _
    $region6: #{tpu_custom_call.1} parent=1 // loop_footer
      %s18 = sadd.s32 1, %s14
    $region7: #{tpu_custom_call.1} parent=1 // loop_footer_branch
      %13 = sbr.rel target = $region3
    $region8: #{tpu_custom_call.1} parent=1 // loop_exit
      _
    %2968 = vsyncpa [#allocation5], 1
    %s2969 = scalar_lea.sflag [#allocation5], 1
    %2970 = vsyncpa %s2969, 1
    %2971 = vsyncpa [#allocation6], 1
    %s2972 = scalar_lea.sflag [#allocation6], 1
    %2973 = vsyncpa %s2972, 1

</llo_original>
